<compile_context>
chip_gen: v5e
topology: v5e:2x2
jax: 0.10.0
libtpu: 0.0.40
codegen_flags: <defaults>
</compile_context>

<pallas_src>
import math
import functools

import jax
import jax.numpy as jnp
from jax.experimental import pallas as pl
from jax.experimental.pallas import tpu as pltpu

LN_EPS = 1e-5  # torch.nn.LayerNorm default


def _layernorm(x, gamma, beta):
    # one-pass mean / variance (halves XLU reduction traffic vs two-pass)
    mean = jnp.mean(x, axis=-1, keepdims=True)
    mean2 = jnp.mean(x * x, axis=-1, keepdims=True)
    var = mean2 - mean * mean
    return (x - mean) * jax.lax.rsqrt(var + LN_EPS) * gamma + beta


def _encoder_layer_kernel(
    x_ref,                         # (S, E) one batch element (batch dim squeezed)
    ln0g_ref, ln0b_ref,            # (1, E) f32
    wq_ref, wk_ref, wv_ref,        # (E, E) bf16, pre-transposed
    bq_ref, bk_ref, bv_ref,        # (1, E) f32
    ow_ref, ob_ref,                # (E, E) bf16 pre-transposed, (1, E) f32
    ln1g_ref, ln1b_ref,            # (1, E) f32
    f1w_ref, f1b_ref,              # (E, 4E) bf16 pre-transposed, (1, 4E) f32
    f2w_ref, f2b_ref,              # (4E, E) bf16 pre-transposed, (1, E) f32
    out_ref,                       # (S, E)
    *, num_heads,
):
    S, E = x_ref.shape
    H = num_heads
    Dh = E // H
    scaling = Dh ** -0.5
    mm_dtype = wq_ref.dtype        # matmul input dtype (bf16)

    x = x_ref[...].astype(jnp.float32)                        # (S, E)
    residual = x

    # ----- pre-norm (layer_norms[0], before=True) -----
    xn = _layernorm(x, ln0g_ref[0, :], ln0b_ref[0, :])
    xn_m = xn.astype(mm_dtype)

    # ----- multi-head self-attention (weights pre-transposed on host) -----
    q = jnp.dot(xn_m, wq_ref[...], preferred_element_type=jnp.float32) + bq_ref[0, :]
    k = jnp.dot(xn_m, wk_ref[...], preferred_element_type=jnp.float32) + bk_ref[0, :]
    v = jnp.dot(xn_m, wv_ref[...], preferred_element_type=jnp.float32) + bv_ref[0, :]
    q = q * scaling

    # batched-head layout: (H, S, Dh)
    qh = jnp.transpose(q.reshape(S, H, Dh).astype(mm_dtype), (1, 0, 2))
    kh = jnp.transpose(k.reshape(S, H, Dh).astype(mm_dtype), (1, 0, 2))
    vh = jnp.transpose(v.reshape(S, H, Dh).astype(mm_dtype), (1, 0, 2))

    scores = jnp.einsum("hqd,hkd->hqk", qh, kh,
                        preferred_element_type=jnp.float32)   # (H, S, S) f32
    scores = scores - jnp.max(scores, axis=-1, keepdims=True)
    p = jnp.exp(scores)
    denom = jnp.sum(p, axis=-1, keepdims=True)
    p = p * pl.reciprocal(denom, approx=True)                 # EUP, not VPU divide

    ctx = jnp.einsum("hqk,hkd->hqd", p.astype(mm_dtype), vh,
                     preferred_element_type=jnp.float32)      # (H, S, Dh)
    attn = jnp.transpose(ctx, (1, 0, 2)).reshape(S, E)        # (S, E)

    attn = jnp.dot(attn.astype(mm_dtype), ow_ref[...],
                   preferred_element_type=jnp.float32) + ob_ref[0, :]

    # res_dropout is identity in eval mode
    x = residual + attn                                       # post-attn residual

    # ----- FFN block (pre-norm with layer_norms[1]) -----
    residual = x
    xn2 = _layernorm(x, ln1g_ref[0, :], ln1b_ref[0, :])
    h1 = jnp.dot(xn2.astype(mm_dtype), f1w_ref[...],
                 preferred_element_type=jnp.float32) + f1b_ref[0, :]
    h1 = jnp.maximum(h1, 0.0)                                 # ReLU (relu_dropout = identity)
    h2 = jnp.dot(h1.astype(mm_dtype), f2w_ref[...],
                 preferred_element_type=jnp.float32) + f2b_ref[0, :]
    x = residual + h2

    out_ref[...] = x.astype(out_ref.dtype)


def prepare_params(params, matmul_dtype=jnp.bfloat16):
    """Convert torch-layout params (as in the nn.Module) to kernel-ready layout:
    weights split q/k/v, pre-transposed, cast to bf16; LN/bias kept f32."""
    E = params["out_w"].shape[0]
    ipw = params["in_proj_w"]                  # (3E, E)
    ipb = params["in_proj_b"].reshape(1, 3 * E)
    f32 = jnp.float32
    return dict(
        ln0_g=params["ln0_g"].astype(f32), ln0_b=params["ln0_b"].astype(f32),
        wq=jnp.asarray(ipw[:E].T, matmul_dtype),
        wk=jnp.asarray(ipw[E:2 * E].T, matmul_dtype),
        wv=jnp.asarray(ipw[2 * E:].T, matmul_dtype),
        bq=ipb[:, :E].astype(f32), bk=ipb[:, E:2 * E].astype(f32),
        bv=ipb[:, 2 * E:].astype(f32),
        ow=jnp.asarray(params["out_w"].T, matmul_dtype), ob=params["out_b"].astype(f32),
        ln1_g=params["ln1_g"].astype(f32), ln1_b=params["ln1_b"].astype(f32),
        f1w=jnp.asarray(params["fc1_w"].T, matmul_dtype), f1b=params["fc1_b"].astype(f32),
        f2w=jnp.asarray(params["fc2_w"].T, matmul_dtype), f2b=params["fc2_b"].astype(f32),
    )


def transformer_encoder_layer(x, prep, num_heads):
    """x: (seq_len, batch, embed_dim) like the PyTorch module.  `prep` = prepare_params(...)."""
    S, B, E = x.shape
    assert E % num_heads == 0, "embed_dim must be divisible by num_heads"
    H = num_heads

    xb = jnp.transpose(x, (1, 0, 2))                          # (B, S, E)

    weight_args = (
        prep["ln0_g"], prep["ln0_b"],
        prep["wq"], prep["wk"], prep["wv"],
        prep["bq"], prep["bk"], prep["bv"],
        prep["ow"], prep["ob"],
        prep["ln1_g"], prep["ln1_b"],
        prep["f1w"], prep["f1b"],
        prep["f2w"], prep["f2b"],
    )

    def full_spec(a):
        zeros = (0,) * a.ndim
        return pl.BlockSpec(a.shape, lambda b, _z=zeros: _z)

    in_specs = [pl.BlockSpec((None, S, E), lambda b: (b, 0, 0))]
    in_specs += [full_spec(a) for a in weight_args]

    kernel = functools.partial(_encoder_layer_kernel, num_heads=num_heads)

    # ---- cost estimate (MXU flops, exp/rsqrt/recip counts, HBM traffic) ----
    flops = B * (2 * S * E * 3 * E        # qkv projections
                 + 4 * S * S * E          # q@k^T and p@v over all heads
                 + 2 * S * E * E          # output projection
                 + 16 * S * E * E)        # fc1 + fc2
    transcendentals = B * (H * S * S + H * S + 4 * S)
    wbytes = sum(int(a.size) * a.dtype.itemsize for a in weight_args)
    bytes_accessed = 2 * int(x.size) * x.dtype.itemsize + wbytes
    cost = pl.CostEstimate(flops=int(flops), transcendentals=int(transcendentals),
                           bytes_accessed=int(bytes_accessed))

    # ---- explicit VMEM budget: resident weights + f32 working set, 2x margin ----
    act_bytes = 4 * (16 * S * E + 2 * H * S * S + 8 * S * E)
    vmem_limit = int(min(100 * 2 ** 20, max(32 * 2 ** 20, 2 * (wbytes + act_bytes))))

    out = pl.pallas_call(
        kernel,
        grid=(B,),
        in_specs=in_specs,
        out_specs=pl.BlockSpec((None, S, E), lambda b: (b, 0, 0)),
        out_shape=jax.ShapeDtypeStruct((B, S, E), x.dtype),
        compiler_params=pltpu.CompilerParams(
            dimension_semantics=("parallel",),      # megacore over batch on v7x
            vmem_limit_bytes=vmem_limit,
        ),
        cost_estimate=cost,
    )(xb, *weight_args)

    return jnp.transpose(out, (1, 0, 2))                      # back to (S, B, E)


# ---------------- pure-JAX f32 reference (module semantics, for verification) ----------------
def _reference(x, params, num_heads):
    S, B, E = x.shape
    Dh = E // num_heads
    scaling = Dh ** -0.5

    def ln(v, g, b):
        m = jnp.mean(v, -1, keepdims=True)
        var = jnp.mean((v - m) ** 2, -1, keepdims=True)
        return (v - m) / jnp.sqrt(var + LN_EPS) * g[0] + b[0]

    residual = x
    xn = ln(x, params["ln0_g"], params["ln0_b"])
    ipw, ipb = params["in_proj_w"], params["in_proj_b"][0]
    q = (xn @ ipw[:E].T + ipb[:E]) * scaling
    k = xn @ ipw[E:2 * E].T + ipb[E:2 * E]
    v = xn @ ipw[2 * E:].T + ipb[2 * E:]

    def split(t):  # (S, B, E) -> (B, H, S, Dh)
        return jnp.transpose(t.reshape(S, B, num_heads, Dh), (1, 2, 0, 3))

    qh, kh, vh = split(q), split(k), split(v)
    scores = jnp.einsum("bhsd,bhtd->bhst", qh, kh)
    p = jax.nn.softmax(scores, axis=-1)
    attn = jnp.einsum("bhst,bhtd->bhsd", p, vh)
    attn = jnp.transpose(attn, (2, 0, 1, 3)).reshape(S, B, E)
    attn = attn @ params["out_w"].T + params["out_b"][0]
    x = residual + attn
    residual = x
    xn2 = ln(x, params["ln1_g"], params["ln1_b"])
    h = jax.nn.relu(xn2 @ params["fc1_w"].T + params["fc1_b"][0])
    h = h @ params["fc2_w"].T + params["fc2_b"][0]
    return residual + h


if __name__ == "__main__":
    S, B, E, H = 8, 2, 32, 4

    key = jax.random.PRNGKey(0)
    keys = jax.random.split(key, 5)

    def xavier(k, out_f, in_f):
        limit = math.sqrt(6.0 / (in_f + out_f))
        return jax.random.uniform(k, (out_f, in_f), jnp.float32, -limit, limit)

    params = dict(
        ln0_g=jnp.ones((1, E), jnp.float32), ln0_b=jnp.zeros((1, E), jnp.float32),
        in_proj_w=xavier(keys[0], 3 * E, E), in_proj_b=jnp.zeros((1, 3 * E), jnp.float32),
        out_w=xavier(keys[1], E, E), out_b=jnp.zeros((1, E), jnp.float32),
        ln1_g=jnp.ones((1, E), jnp.float32), ln1_b=jnp.zeros((1, E), jnp.float32),
        fc1_w=xavier(keys[2], 4 * E, E), fc1_b=jnp.zeros((1, 4 * E), jnp.float32),
        fc2_w=xavier(keys[3], E, 4 * E), fc2_b=jnp.zeros((1, E), jnp.float32),
    )

    x = jax.random.normal(keys[4], (S, B, E), jnp.float32)

    prep = prepare_params(params, matmul_dtype=jnp.bfloat16)
    y = transformer_encoder_layer(x, prep, H)
    jax.block_until_ready(y)

    y_ref = _reference(x, params, H)
    assert y.shape == (S, B, E)
    # Kernel uses bf16 matmul inputs (f32 accumulation) and an approx reciprocal
    # in the softmax, so compare against the f32 reference with a bf16-level tolerance.
    assert jnp.allclose(y, y_ref, atol=5e-2, rtol=5e-2), "mismatch vs pure-JAX reference"

    print("KERNEL_OK")
</pallas_src>

<mosaic_0001>
module attributes {stable_mosaic.version = 11 : i64} {
  func.func @_encoder_layer_kernel(%arg0: i32, %arg1: memref<1x8x32xf32, #tpu.memory_space<vmem>>, %arg2: memref<1x32xf32, #tpu.memory_space<vmem>>, %arg3: memref<1x32xf32, #tpu.memory_space<vmem>>, %arg4: memref<32x32xbf16, #tpu.memory_space<vmem>>, %arg5: memref<32x32xbf16, #tpu.memory_space<vmem>>, %arg6: memref<32x32xbf16, #tpu.memory_space<vmem>>, %arg7: memref<1x32xf32, #tpu.memory_space<vmem>>, %arg8: memref<1x32xf32, #tpu.memory_space<vmem>>, %arg9: memref<1x32xf32, #tpu.memory_space<vmem>>, %arg10: memref<32x32xbf16, #tpu.memory_space<vmem>>, %arg11: memref<1x32xf32, #tpu.memory_space<vmem>>, %arg12: memref<1x32xf32, #tpu.memory_space<vmem>>, %arg13: memref<1x32xf32, #tpu.memory_space<vmem>>, %arg14: memref<32x128xbf16, #tpu.memory_space<vmem>>, %arg15: memref<1x128xf32, #tpu.memory_space<vmem>>, %arg16: memref<128x32xbf16, #tpu.memory_space<vmem>>, %arg17: memref<1x32xf32, #tpu.memory_space<vmem>>, %arg18: memref<1x8x32xf32, #tpu.memory_space<vmem>>) attributes {dimension_semantics = [#tpu.dimension_semantics<parallel>], iteration_bounds = array<i64: 2>, scalar_prefetch = 0 : i64, scratch_operands = 0 : i64, tpu.core_type = #tpu.core_type<tc>, window_params = [{transform_indices = @transform_0, window_bounds = array<i64: 1, 8, 32>}, {pipeline_mode = #tpu.pipeline_mode<synchronous>, transform_indices = @transform_1, window_bounds = array<i64: 1, 32>}, {pipeline_mode = #tpu.pipeline_mode<synchronous>, transform_indices = @transform_2, window_bounds = array<i64: 1, 32>}, {pipeline_mode = #tpu.pipeline_mode<synchronous>, transform_indices = @transform_3, window_bounds = array<i64: 32, 32>}, {pipeline_mode = #tpu.pipeline_mode<synchronous>, transform_indices = @transform_4, window_bounds = array<i64: 32, 32>}, {pipeline_mode = #tpu.pipeline_mode<synchronous>, transform_indices = @transform_5, window_bounds = array<i64: 32, 32>}, {pipeline_mode = #tpu.pipeline_mode<synchronous>, transform_indices = @transform_6, window_bounds = array<i64: 1, 32>}, {pipeline_mode = #tpu.pipeline_mode<synchronous>, transform_indices = @transform_7, window_bounds = array<i64: 1, 32>}, {pipeline_mode = #tpu.pipeline_mode<synchronous>, transform_indices = @transform_8, window_bounds = array<i64: 1, 32>}, {pipeline_mode = #tpu.pipeline_mode<synchronous>, transform_indices = @transform_9, window_bounds = array<i64: 32, 32>}, {pipeline_mode = #tpu.pipeline_mode<synchronous>, transform_indices = @transform_10, window_bounds = array<i64: 1, 32>}, {pipeline_mode = #tpu.pipeline_mode<synchronous>, transform_indices = @transform_11, window_bounds = array<i64: 1, 32>}, {pipeline_mode = #tpu.pipeline_mode<synchronous>, transform_indices = @transform_12, window_bounds = array<i64: 1, 32>}, {pipeline_mode = #tpu.pipeline_mode<synchronous>, transform_indices = @transform_13, window_bounds = array<i64: 32, 128>}, {pipeline_mode = #tpu.pipeline_mode<synchronous>, transform_indices = @transform_14, window_bounds = array<i64: 1, 128>}, {pipeline_mode = #tpu.pipeline_mode<synchronous>, transform_indices = @transform_15, window_bounds = array<i64: 128, 32>}, {pipeline_mode = #tpu.pipeline_mode<synchronous>, transform_indices = @transform_16, window_bounds = array<i64: 1, 32>}, {transform_indices = @transform_17, window_bounds = array<i64: 1, 8, 32>}]} {
    %c0 = arith.constant 0 : index
    %c0_0 = arith.constant 0 : index
    %c0_1 = arith.constant 0 : index
    %0 = vector.load %arg1[%c0, %c0_0, %c0_1] : memref<1x8x32xf32, #tpu.memory_space<vmem>>, vector<1x8x32xf32>
    %1 = vector.shape_cast %0 : vector<1x8x32xf32> to vector<8x32xf32>
    %c0_2 = arith.constant 0 : index
    %c0_3 = arith.constant 0 : index
    %2 = vector.load %arg2[%c0_2, %c0_3] : memref<1x32xf32, #tpu.memory_space<vmem>>, vector<1x32xf32>
    %3 = vector.shape_cast %2 : vector<1x32xf32> to vector<32xf32>
    %c0_4 = arith.constant 0 : index
    %c0_5 = arith.constant 0 : index
    %4 = vector.load %arg3[%c0_4, %c0_5] : memref<1x32xf32, #tpu.memory_space<vmem>>, vector<1x32xf32>
    %5 = vector.shape_cast %4 : vector<1x32xf32> to vector<32xf32>
    %cst = arith.constant dense<0.000000e+00> : vector<8xf32>
    %6 = vector.multi_reduction <add>, %1, %cst [1] : vector<8x32xf32> to vector<8xf32>
    %7 = vector.shape_cast %6 : vector<8xf32> to vector<8x1xf32>
    %cst_6 = arith.constant 3.200000e+01 : f32
    %8 = vector.broadcast %cst_6 : f32 to vector<8x1xf32>
    %9 = arith.divf %7, %8 : vector<8x1xf32>
    %10 = arith.mulf %1, %1 : vector<8x32xf32>
    %cst_7 = arith.constant dense<0.000000e+00> : vector<8xf32>
    %11 = vector.multi_reduction <add>, %10, %cst_7 [1] : vector<8x32xf32> to vector<8xf32>
    %12 = vector.shape_cast %11 : vector<8xf32> to vector<8x1xf32>
    %cst_8 = arith.constant 3.200000e+01 : f32
    %13 = vector.broadcast %cst_8 : f32 to vector<8x1xf32>
    %14 = arith.divf %12, %13 : vector<8x1xf32>
    %15 = arith.mulf %9, %9 : vector<8x1xf32>
    %16 = arith.subf %14, %15 : vector<8x1xf32>
    %17 = vector.broadcast %9 : vector<8x1xf32> to vector<8x32xf32>
    %18 = arith.subf %1, %17 : vector<8x32xf32>
    %cst_9 = arith.constant 9.99999974E-6 : f32
    %19 = vector.broadcast %cst_9 : f32 to vector<8x1xf32>
    %20 = arith.addf %16, %19 : vector<8x1xf32>
    %21 = math.rsqrt %20 : vector<8x1xf32>
    %22 = vector.broadcast %21 : vector<8x1xf32> to vector<8x32xf32>
    %23 = arith.mulf %18, %22 : vector<8x32xf32>
    %24 = vector.shape_cast %3 : vector<32xf32> to vector<1x32xf32>
    %25 = vector.broadcast %24 : vector<1x32xf32> to vector<8x32xf32>
    %26 = arith.mulf %23, %25 : vector<8x32xf32>
    %27 = vector.shape_cast %5 : vector<32xf32> to vector<1x32xf32>
    %28 = vector.broadcast %27 : vector<1x32xf32> to vector<8x32xf32>
    %29 = arith.addf %26, %28 : vector<8x32xf32>
    %30 = arith.truncf %29 : vector<8x32xf32> to vector<8x32xbf16>
    %c0_10 = arith.constant 0 : index
    %c0_11 = arith.constant 0 : index
    %31 = vector.load %arg4[%c0_10, %c0_11] : memref<32x32xbf16, #tpu.memory_space<vmem>>, vector<32x32xbf16>
    %cst_12 = arith.constant dense<0.000000e+00> : vector<8x32xf32>
    %32 = tpu.matmul %30, %31, %cst_12 {dimension_numbers = #tpu.dot_dimension_numbers<[1], [0], [0], [1], [0, 0, 1, 1], [], []>} : vector<8x32xbf16>, vector<32x32xbf16>, vector<8x32xf32> -> vector<8x32xf32>
    %c0_13 = arith.constant 0 : index
    %c0_14 = arith.constant 0 : index
    %33 = vector.load %arg7[%c0_13, %c0_14] : memref<1x32xf32, #tpu.memory_space<vmem>>, vector<1x32xf32>
    %34 = vector.shape_cast %33 : vector<1x32xf32> to vector<32xf32>
    %35 = vector.shape_cast %34 : vector<32xf32> to vector<1x32xf32>
    %36 = vector.broadcast %35 : vector<1x32xf32> to vector<8x32xf32>
    %37 = arith.addf %32, %36 : vector<8x32xf32>
    %c0_15 = arith.constant 0 : index
    %c0_16 = arith.constant 0 : index
    %38 = vector.load %arg5[%c0_15, %c0_16] : memref<32x32xbf16, #tpu.memory_space<vmem>>, vector<32x32xbf16>
    %cst_17 = arith.constant dense<0.000000e+00> : vector<8x32xf32>
    %39 = tpu.matmul %30, %38, %cst_17 {dimension_numbers = #tpu.dot_dimension_numbers<[1], [0], [0], [1], [0, 0, 1, 1], [], []>} : vector<8x32xbf16>, vector<32x32xbf16>, vector<8x32xf32> -> vector<8x32xf32>
    %c0_18 = arith.constant 0 : index
    %c0_19 = arith.constant 0 : index
    %40 = vector.load %arg8[%c0_18, %c0_19] : memref<1x32xf32, #tpu.memory_space<vmem>>, vector<1x32xf32>
    %41 = vector.shape_cast %40 : vector<1x32xf32> to vector<32xf32>
    %42 = vector.shape_cast %41 : vector<32xf32> to vector<1x32xf32>
    %43 = vector.broadcast %42 : vector<1x32xf32> to vector<8x32xf32>
    %44 = arith.addf %39, %43 : vector<8x32xf32>
    %c0_20 = arith.constant 0 : index
    %c0_21 = arith.constant 0 : index
    %45 = vector.load %arg6[%c0_20, %c0_21] : memref<32x32xbf16, #tpu.memory_space<vmem>>, vector<32x32xbf16>
    %cst_22 = arith.constant dense<0.000000e+00> : vector<8x32xf32>
    %46 = tpu.matmul %30, %45, %cst_22 {dimension_numbers = #tpu.dot_dimension_numbers<[1], [0], [0], [1], [0, 0, 1, 1], [], []>} : vector<8x32xbf16>, vector<32x32xbf16>, vector<8x32xf32> -> vector<8x32xf32>
    %c0_23 = arith.constant 0 : index
    %c0_24 = arith.constant 0 : index
    %47 = vector.load %arg9[%c0_23, %c0_24] : memref<1x32xf32, #tpu.memory_space<vmem>>, vector<1x32xf32>
    %48 = vector.shape_cast %47 : vector<1x32xf32> to vector<32xf32>
    %49 = vector.shape_cast %48 : vector<32xf32> to vector<1x32xf32>
    %50 = vector.broadcast %49 : vector<1x32xf32> to vector<8x32xf32>
    %51 = arith.addf %46, %50 : vector<8x32xf32>
    %cst_25 = arith.constant 0.353553385 : f32
    %52 = vector.broadcast %cst_25 : f32 to vector<8x32xf32>
    %53 = arith.mulf %37, %52 : vector<8x32xf32>
    %54 = vector.shape_cast %53 : vector<8x32xf32> to vector<8x4x8xf32>
    %55 = arith.truncf %54 : vector<8x4x8xf32> to vector<8x4x8xbf16>
    %56 = tpu.transpose %55, [1, 0, 2] : vector<8x4x8xbf16> -> vector<4x8x8xbf16>
    %57 = vector.shape_cast %44 : vector<8x32xf32> to vector<8x4x8xf32>
    %58 = arith.truncf %57 : vector<8x4x8xf32> to vector<8x4x8xbf16>
    %59 = tpu.transpose %58, [1, 0, 2] : vector<8x4x8xbf16> -> vector<4x8x8xbf16>
    %60 = vector.shape_cast %51 : vector<8x32xf32> to vector<8x4x8xf32>
    %61 = arith.truncf %60 : vector<8x4x8xf32> to vector<8x4x8xbf16>
    %62 = tpu.transpose %61, [1, 0, 2] : vector<8x4x8xbf16> -> vector<4x8x8xbf16>
    "tpu.trace_start"() <{level = 10 : i32, message = "hqd,hkd->hqk"}> : () -> ()
    %cst_26 = arith.constant dense<0.000000e+00> : vector<4x8x8xf32>
    %63 = tpu.matmul %56, %59, %cst_26 {dimension_numbers = #tpu.dot_dimension_numbers<[2], [2], [1], [1], [0, 0, 0, 1, 1, 1], [0], [0]>} : vector<4x8x8xbf16>, vector<4x8x8xbf16>, vector<4x8x8xf32> -> vector<4x8x8xf32>
    "tpu.trace_stop"() : () -> ()
    %cst_27 = arith.constant dense<0xFF800000> : vector<4x8xf32>
    %64 = vector.multi_reduction <maximumf>, %63, %cst_27 [2] : vector<4x8x8xf32> to vector<4x8xf32>
    %65 = vector.shape_cast %64 : vector<4x8xf32> to vector<4x8x1xf32>
    %66 = vector.broadcast %65 : vector<4x8x1xf32> to vector<4x8x8xf32>
    %67 = arith.subf %63, %66 : vector<4x8x8xf32>
    %68 = math.exp %67 : vector<4x8x8xf32>
    %cst_28 = arith.constant dense<0.000000e+00> : vector<4x8xf32>
    %69 = vector.multi_reduction <add>, %68, %cst_28 [2] : vector<4x8x8xf32> to vector<4x8xf32>
    %70 = vector.shape_cast %69 : vector<4x8xf32> to vector<4x8x1xf32>
    %71 = tpu.reciprocal %70 {approx = true} : vector<4x8x1xf32> -> vector<4x8x1xf32>
    %72 = vector.broadcast %71 : vector<4x8x1xf32> to vector<4x8x8xf32>
    %73 = arith.mulf %68, %72 : vector<4x8x8xf32>
    %74 = arith.truncf %73 : vector<4x8x8xf32> to vector<4x8x8xbf16>
    "tpu.trace_start"() <{level = 10 : i32, message = "hqk,hkd->hqd"}> : () -> ()
    %cst_29 = arith.constant dense<0.000000e+00> : vector<4x8x8xf32>
    %75 = tpu.matmul %74, %62, %cst_29 {dimension_numbers = #tpu.dot_dimension_numbers<[2], [1], [1], [2], [0, 0, 0, 1, 1, 2], [0], [0]>} : vector<4x8x8xbf16>, vector<4x8x8xbf16>, vector<4x8x8xf32> -> vector<4x8x8xf32>
    "tpu.trace_stop"() : () -> ()
    %76 = tpu.transpose %75, [1, 0, 2] : vector<4x8x8xf32> -> vector<8x4x8xf32>
    %77 = vector.shape_cast %76 : vector<8x4x8xf32> to vector<8x32xf32>
    %78 = arith.truncf %77 : vector<8x32xf32> to vector<8x32xbf16>
    %c0_30 = arith.constant 0 : index
    %c0_31 = arith.constant 0 : index
    %79 = vector.load %arg10[%c0_30, %c0_31] : memref<32x32xbf16, #tpu.memory_space<vmem>>, vector<32x32xbf16>
    %cst_32 = arith.constant dense<0.000000e+00> : vector<8x32xf32>
    %80 = tpu.matmul %78, %79, %cst_32 {dimension_numbers = #tpu.dot_dimension_numbers<[1], [0], [0], [1], [0, 0, 1, 1], [], []>} : vector<8x32xbf16>, vector<32x32xbf16>, vector<8x32xf32> -> vector<8x32xf32>
    %c0_33 = arith.constant 0 : index
    %c0_34 = arith.constant 0 : index
    %81 = vector.load %arg11[%c0_33, %c0_34] : memref<1x32xf32, #tpu.memory_space<vmem>>, vector<1x32xf32>
    %82 = vector.shape_cast %81 : vector<1x32xf32> to vector<32xf32>
    %83 = vector.shape_cast %82 : vector<32xf32> to vector<1x32xf32>
    %84 = vector.broadcast %83 : vector<1x32xf32> to vector<8x32xf32>
    %85 = arith.addf %80, %84 : vector<8x32xf32>
    %86 = arith.addf %1, %85 : vector<8x32xf32>
    %c0_35 = arith.constant 0 : index
    %c0_36 = arith.constant 0 : index
    %87 = vector.load %arg12[%c0_35, %c0_36] : memref<1x32xf32, #tpu.memory_space<vmem>>, vector<1x32xf32>
    %88 = vector.shape_cast %87 : vector<1x32xf32> to vector<32xf32>
    %c0_37 = arith.constant 0 : index
    %c0_38 = arith.constant 0 : index
    %89 = vector.load %arg13[%c0_37, %c0_38] : memref<1x32xf32, #tpu.memory_space<vmem>>, vector<1x32xf32>
    %90 = vector.shape_cast %89 : vector<1x32xf32> to vector<32xf32>
    %cst_39 = arith.constant dense<0.000000e+00> : vector<8xf32>
    %91 = vector.multi_reduction <add>, %86, %cst_39 [1] : vector<8x32xf32> to vector<8xf32>
    %92 = vector.shape_cast %91 : vector<8xf32> to vector<8x1xf32>
    %cst_40 = arith.constant 3.200000e+01 : f32
    %93 = vector.broadcast %cst_40 : f32 to vector<8x1xf32>
    %94 = arith.divf %92, %93 : vector<8x1xf32>
    %95 = arith.mulf %86, %86 : vector<8x32xf32>
    %cst_41 = arith.constant dense<0.000000e+00> : vector<8xf32>
    %96 = vector.multi_reduction <add>, %95, %cst_41 [1] : vector<8x32xf32> to vector<8xf32>
    %97 = vector.shape_cast %96 : vector<8xf32> to vector<8x1xf32>
    %cst_42 = arith.constant 3.200000e+01 : f32
    %98 = vector.broadcast %cst_42 : f32 to vector<8x1xf32>
    %99 = arith.divf %97, %98 : vector<8x1xf32>
    %100 = arith.mulf %94, %94 : vector<8x1xf32>
    %101 = arith.subf %99, %100 : vector<8x1xf32>
    %102 = vector.broadcast %94 : vector<8x1xf32> to vector<8x32xf32>
    %103 = arith.subf %86, %102 : vector<8x32xf32>
    %cst_43 = arith.constant 9.99999974E-6 : f32
    %104 = vector.broadcast %cst_43 : f32 to vector<8x1xf32>
    %105 = arith.addf %101, %104 : vector<8x1xf32>
    %106 = math.rsqrt %105 : vector<8x1xf32>
    %107 = vector.broadcast %106 : vector<8x1xf32> to vector<8x32xf32>
    %108 = arith.mulf %103, %107 : vector<8x32xf32>
    %109 = vector.shape_cast %88 : vector<32xf32> to vector<1x32xf32>
    %110 = vector.broadcast %109 : vector<1x32xf32> to vector<8x32xf32>
    %111 = arith.mulf %108, %110 : vector<8x32xf32>
    %112 = vector.shape_cast %90 : vector<32xf32> to vector<1x32xf32>
    %113 = vector.broadcast %112 : vector<1x32xf32> to vector<8x32xf32>
    %114 = arith.addf %111, %113 : vector<8x32xf32>
    %115 = arith.truncf %114 : vector<8x32xf32> to vector<8x32xbf16>
    %c0_44 = arith.constant 0 : index
    %c0_45 = arith.constant 0 : index
    %116 = vector.load %arg14[%c0_44, %c0_45] : memref<32x128xbf16, #tpu.memory_space<vmem>>, vector<32x128xbf16>
    %cst_46 = arith.constant dense<0.000000e+00> : vector<8x128xf32>
    %117 = tpu.matmul %115, %116, %cst_46 {dimension_numbers = #tpu.dot_dimension_numbers<[1], [0], [0], [1], [0, 0, 1, 1], [], []>} : vector<8x32xbf16>, vector<32x128xbf16>, vector<8x128xf32> -> vector<8x128xf32>
    %c0_47 = arith.constant 0 : index
    %c0_48 = arith.constant 0 : index
    %118 = vector.load %arg15[%c0_47, %c0_48] : memref<1x128xf32, #tpu.memory_space<vmem>>, vector<1x128xf32>
    %119 = vector.shape_cast %118 : vector<1x128xf32> to vector<128xf32>
    %120 = vector.shape_cast %119 : vector<128xf32> to vector<1x128xf32>
    %121 = vector.broadcast %120 : vector<1x128xf32> to vector<8x128xf32>
    %122 = arith.addf %117, %121 : vector<8x128xf32>
    %cst_49 = arith.constant 0.000000e+00 : f32
    %123 = vector.broadcast %cst_49 : f32 to vector<8x128xf32>
    %124 = arith.maximumf %122, %123 : vector<8x128xf32>
    %125 = arith.truncf %124 : vector<8x128xf32> to vector<8x128xbf16>
    %c0_50 = arith.constant 0 : index
    %c0_51 = arith.constant 0 : index
    %126 = vector.load %arg16[%c0_50, %c0_51] : memref<128x32xbf16, #tpu.memory_space<vmem>>, vector<128x32xbf16>
    %cst_52 = arith.constant dense<0.000000e+00> : vector<8x32xf32>
    %127 = tpu.matmul %125, %126, %cst_52 {dimension_numbers = #tpu.dot_dimension_numbers<[1], [0], [0], [1], [0, 0, 1, 1], [], []>} : vector<8x128xbf16>, vector<128x32xbf16>, vector<8x32xf32> -> vector<8x32xf32>
    %c0_53 = arith.constant 0 : index
    %c0_54 = arith.constant 0 : index
    %128 = vector.load %arg17[%c0_53, %c0_54] : memref<1x32xf32, #tpu.memory_space<vmem>>, vector<1x32xf32>
    %129 = vector.shape_cast %128 : vector<1x32xf32> to vector<32xf32>
    %130 = vector.shape_cast %129 : vector<32xf32> to vector<1x32xf32>
    %131 = vector.broadcast %130 : vector<1x32xf32> to vector<8x32xf32>
    %132 = arith.addf %127, %131 : vector<8x32xf32>
    %133 = arith.addf %86, %132 : vector<8x32xf32>
    %c0_55 = arith.constant 0 : index
    %c0_56 = arith.constant 0 : index
    %c0_57 = arith.constant 0 : index
    %134 = vector.load %arg18[%c0_55, %c0_56, %c0_57] : memref<1x8x32xf32, #tpu.memory_space<vmem>>, vector<1x8x32xf32>
    %135 = vector.shape_cast %134 : vector<1x8x32xf32> to vector<8x32xf32>
    %136 = vector.shape_cast %133 : vector<8x32xf32> to vector<1x8x32xf32>
    tpu.vector_store %arg18[%c0_55, %c0_56, %c0_57], %136 {strides = array<i32>} : memref<1x8x32xf32, #tpu.memory_space<vmem>>, vector<1x8x32xf32>,
    return
  }
  func.func @transform_0(%arg0: i32) -> (i32, i32, i32) {
    %c0_i32 = arith.constant 0 : i32
    %c0_i32_0 = arith.constant 0 : i32
    %c0_i32_1 = arith.constant 0 : i32
    return %arg0, %c0_i32, %c0_i32_0 : i32, i32, i32
  }
  func.func @transform_1(%arg0: i32) -> (i32, i32) {
    %c0_i32 = arith.constant 0 : i32
    %c0_i32_0 = arith.constant 0 : i32
    %c0_i32_1 = arith.constant 0 : i32
    return %c0_i32, %c0_i32_0 : i32, i32
  }
  func.func @transform_2(%arg0: i32) -> (i32, i32) {
    %c0_i32 = arith.constant 0 : i32
    %c0_i32_0 = arith.constant 0 : i32
    %c0_i32_1 = arith.constant 0 : i32
    return %c0_i32, %c0_i32_0 : i32, i32
  }
  func.func @transform_3(%arg0: i32) -> (i32, i32) {
    %c0_i32 = arith.constant 0 : i32
    %c0_i32_0 = arith.constant 0 : i32
    %c0_i32_1 = arith.constant 0 : i32
    return %c0_i32, %c0_i32_0 : i32, i32
  }
  func.func @transform_4(%arg0: i32) -> (i32, i32) {
    %c0_i32 = arith.constant 0 : i32
    %c0_i32_0 = arith.constant 0 : i32
    %c0_i32_1 = arith.constant 0 : i32
    return %c0_i32, %c0_i32_0 : i32, i32
  }
  func.func @transform_5(%arg0: i32) -> (i32, i32) {
    %c0_i32 = arith.constant 0 : i32
    %c0_i32_0 = arith.constant 0 : i32
    %c0_i32_1 = arith.constant 0 : i32
    return %c0_i32, %c0_i32_0 : i32, i32
  }
  func.func @transform_6(%arg0: i32) -> (i32, i32) {
    %c0_i32 = arith.constant 0 : i32
    %c0_i32_0 = arith.constant 0 : i32
    %c0_i32_1 = arith.constant 0 : i32
    return %c0_i32, %c0_i32_0 : i32, i32
  }
  func.func @transform_7(%arg0: i32) -> (i32, i32) {
    %c0_i32 = arith.constant 0 : i32
    %c0_i32_0 = arith.constant 0 : i32
    %c0_i32_1 = arith.constant 0 : i32
    return %c0_i32, %c0_i32_0 : i32, i32
  }
  func.func @transform_8(%arg0: i32) -> (i32, i32) {
    %c0_i32 = arith.constant 0 : i32
    %c0_i32_0 = arith.constant 0 : i32
    %c0_i32_1 = arith.constant 0 : i32
    return %c0_i32, %c0_i32_0 : i32, i32
  }
  func.func @transform_9(%arg0: i32) -> (i32, i32) {
    %c0_i32 = arith.constant 0 : i32
    %c0_i32_0 = arith.constant 0 : i32
    %c0_i32_1 = arith.constant 0 : i32
    return %c0_i32, %c0_i32_0 : i32, i32
  }
  func.func @transform_10(%arg0: i32) -> (i32, i32) {
    %c0_i32 = arith.constant 0 : i32
    %c0_i32_0 = arith.constant 0 : i32
    %c0_i32_1 = arith.constant 0 : i32
    return %c0_i32, %c0_i32_0 : i32, i32
  }
  func.func @transform_11(%arg0: i32) -> (i32, i32) {
    %c0_i32 = arith.constant 0 : i32
    %c0_i32_0 = arith.constant 0 : i32
    %c0_i32_1 = arith.constant 0 : i32
    return %c0_i32, %c0_i32_0 : i32, i32
  }
  func.func @transform_12(%arg0: i32) -> (i32, i32) {
    %c0_i32 = arith.constant 0 : i32
    %c0_i32_0 = arith.constant 0 : i32
    %c0_i32_1 = arith.constant 0 : i32
    return %c0_i32, %c0_i32_0 : i32, i32
  }
  func.func @transform_13(%arg0: i32) -> (i32, i32) {
    %c0_i32 = arith.constant 0 : i32
    %c0_i32_0 = arith.constant 0 : i32
    %c0_i32_1 = arith.constant 0 : i32
    return %c0_i32, %c0_i32_0 : i32, i32
  }
  func.func @transform_14(%arg0: i32) -> (i32, i32) {
    %c0_i32 = arith.constant 0 : i32
    %c0_i32_0 = arith.constant 0 : i32
    %c0_i32_1 = arith.constant 0 : i32
    return %c0_i32, %c0_i32_0 : i32, i32
  }
  func.func @transform_15(%arg0: i32) -> (i32, i32) {
    %c0_i32 = arith.constant 0 : i32
    %c0_i32_0 = arith.constant 0 : i32
    %c0_i32_1 = arith.constant 0 : i32
    return %c0_i32, %c0_i32_0 : i32, i32
  }
  func.func @transform_16(%arg0: i32) -> (i32, i32) {
    %c0_i32 = arith.constant 0 : i32
    %c0_i32_0 = arith.constant 0 : i32
    %c0_i32_1 = arith.constant 0 : i32
    return %c0_i32, %c0_i32_0 : i32, i32
  }
  func.func @transform_17(%arg0: i32) -> (i32, i32, i32) {
    %c0_i32 = arith.constant 0 : i32
    %c0_i32_0 = arith.constant 0 : i32
    %c0_i32_1 = arith.constant 0 : i32
    return %arg0, %c0_i32, %c0_i32_0 : i32, i32, i32
  }
}

</mosaic_0001>

<llo_original>
// kernel: tpu_custom_call.1
$region0: #{tpu_custom_call.1}
  #allocation0 [shape = 'u32[]', space=smem, size = 0x4, offset = 0x4, fixed_abs, tag = 'smem constant byte address 0x4 - core index']
  #allocation1 [shape = 'u32[72,128]{1,0:T(1,128)}', space=vmem, size = 0x9000, scoped, tag = 'internal scratch']
  %s0 = inlined_call_operand.vmem [shape: f32[2,8,32], index: 0, kind: input, shape index: {}]
  %s1 = inlined_call_operand.hbm [shape: f32[1,32], index: 1, kind: input, shape index: {}]
  %s2 = inlined_call_operand.vmem [shape: f32[1,32], index: 2, kind: input, shape index: {}]
  %s3 = inlined_call_operand.vmem [shape: bf16[32,32], index: 3, kind: input, shape index: {}]
  %s4 = inlined_call_operand.vmem [shape: bf16[32,32], index: 4, kind: input, shape index: {}]
  %s5 = inlined_call_operand.vmem [shape: bf16[32,32], index: 5, kind: input, shape index: {}]
  %s6 = inlined_call_operand.vmem [shape: f32[1,32], index: 6, kind: input, shape index: {}]
  %s7 = inlined_call_operand.vmem [shape: f32[1,32], index: 7, kind: input, shape index: {}]
  %s8 = inlined_call_operand.vmem [shape: f32[1,32], index: 8, kind: input, shape index: {}]
  %s9 = inlined_call_operand.vmem [shape: bf16[32,32], index: 9, kind: input, shape index: {}]
  %s10 = inlined_call_operand.vmem [shape: f32[1,32], index: 10, kind: input, shape index: {}]
  %s11 = inlined_call_operand.vmem [shape: f32[1,32], index: 11, kind: input, shape index: {}]
  %s12 = inlined_call_operand.vmem [shape: f32[1,32], index: 12, kind: input, shape index: {}]
  %s13 = inlined_call_operand.hbm [shape: bf16[32,128], index: 13, kind: input, shape index: {}]
  %s14 = inlined_call_operand.vmem [shape: f32[1,128], index: 14, kind: input, shape index: {}]
  %s15 = inlined_call_operand.vmem [shape: bf16[128,32], index: 15, kind: input, shape index: {}]
  %s16 = inlined_call_operand.vmem [shape: f32[1,32], index: 16, kind: input, shape index: {}]
  %s17 = inlined_call_operand.hbm [shape: f32[2,8,32], index: 17, kind: output, shape index: {}]
  %s18 = sld [smem:[#allocation0]]
  $region109: #{tpu_custom_call.1} parent=0
    _
  %s20 = ssub.s32 1, %s18
  %s21 = scalar_select 0, %s20, %s18
  $region1: #{tpu_custom_call.1} parent=0
    #allocation2 [shape = 'u8[512]{0}', space=vmem, size = 0x400, scoped, tag = 'input window, operand 1, single buffered']
    #allocation3 [shape = 's32[2]{0}', space=sflag, size = 0x8, scoped, tag = 'scoped memory for tpu_custom_call.1']
    #allocation4 [shape = 's32[2]{0}', space=sflag, size = 0x8, scoped, tag = 'scoped memory for tpu_custom_call.1']
    #allocation5 [shape = 'u8[8192]{0}', space=vmem, size = 0x2000, scoped, tag = 'input window, operand 13, single buffered']
    #allocation6 [shape = 's32[1]{0}', space=sflag, size = 0x4, scoped, tag = 'scoped memory for tpu_custom_call.1']
    #allocation7 [shape = 'u8[8192]{0}', space=vmem, size = 0x2000, scoped, tag = 'output window, operand 0']
    %22 = vsyncpa [#allocation3], 0
    %23 = vsyncpa [#allocation6], 0
    %24 = vsyncpa [#allocation4], 0
    %s25 = scalar_lea.sflag [#allocation4], 1
    %26 = vsyncpa %s25, 0
    loop: start=0, step=1, limit=4
    $region2: #{tpu_custom_call.1} parent=1 // loop_pre_header
      _
    $region3: #{tpu_custom_call.1} parent=1 // loop_header
      %s28 = sphi 0, %s32
      %p29 = scmp.ge.s32.totalorder %s28, 4
      %s38 = sphi 0, %s40
      %s41 = sphi 0, %s38
      %s42 = sphi 0, %s41
      %s58 = sphi 0, %s42
      %s62 = sphi 0, %s62
      %s64 = sphi 0, %s62
      %s65 = sphi 0, %s64
      %s79 = sphi 0, %s65
      %s83 = sphi 0, %s83
      %s85 = sphi 0, %s83
      %s86 = sphi 0, %s85
      %s100 = sphi 0, %s86
      %s104 = sphi 0, %s104
      %s106 = sphi 0, %s104
      %s107 = sphi 0, %s106
      %s121 = sphi 0, %s107
      %s125 = sphi 0, %s125
      %s127 = sphi 0, %s125
      %s128 = sphi 0, %s127
      %s142 = sphi 0, %s128
      %s146 = sphi 0, %s146
      %s148 = sphi 0, %s146
      %s149 = sphi 0, %s148
      %s163 = sphi 0, %s149
      %s167 = sphi 0, %s167
      %s169 = sphi 0, %s167
      %s170 = sphi 0, %s169
      %s184 = sphi 0, %s170
      %s188 = sphi 0, %s188
      %s190 = sphi 0, %s188
      %s191 = sphi 0, %s190
      %s205 = sphi 0, %s191
      %s209 = sphi 0, %s209
      %s211 = sphi 0, %s209
      %s212 = sphi 0, %s211
      %s226 = sphi 0, %s212
      %s230 = sphi 0, %s230
      %s232 = sphi 0, %s230
      %s233 = sphi 0, %s232
      %s247 = sphi 0, %s233
      %s251 = sphi 0, %s251
      %s253 = sphi 0, %s251
      %s254 = sphi 0, %s253
      %s268 = sphi 0, %s254
      %s272 = sphi 0, %s272
      %s274 = sphi 0, %s272
      %s275 = sphi 0, %s274
      %s289 = sphi 0, %s275
      %s293 = sphi 0, %s293
      %s295 = sphi 0, %s293
      %s296 = sphi 0, %s295
      %s310 = sphi 0, %s296
      %s314 = sphi 0, %s314
      %s316 = sphi 0, %s314
      %s317 = sphi 0, %s316
      %s331 = sphi 0, %s317
      %s335 = sphi 0, %s335
      %s337 = sphi 0, %s335
      %s338 = sphi 0, %s337
      %s352 = sphi 0, %s338
      %s356 = sphi 0, %s356
      %s358 = sphi 0, %s356
      %s359 = sphi 0, %s358
      %s373 = sphi 0, %s359
      %s377 = sphi 0, %s377
      %s379 = sphi 0, %s377
      %s380 = sphi 0, %s379
      %s394 = sphi 0, %s380
      %s400 = sphi 0, %s402
      %s403 = sphi 0, %s400
      %s404 = sphi 0, %s403
      %s420 = sphi 0, %s404
    $region4: #{tpu_custom_call.1} parent=1 // loop_header_branch
      %31 = sbr.rel (%p29) target = $region8
    $region5: #{tpu_custom_call.1} parent=1 // loop_body
      %s33 = ssub.s32 %s28, 1
      %s34 = ssub.s32 %s28, 2
      %s35 = sadd.s32 %s28, 1
      %s36 = ssub.s32 %s28, %s35
      %p37 = scmp.eq.s32.totalorder %s36, 0
      %s39 = sadd.s32 %s38, 1
      %s40 = scalar_select %p37, %s38, %s39
      %p43 = pneg %p37
      %p44 = scmp.eq.s32.totalorder %s28, 1
      %p45 = por %p43, %p44
      %p46 = scmp.ne.s32.totalorder %s38, %s41
      %p47 = scmp.eq.s32.totalorder %s28, 0
      %p48 = por %p46, %p47
      %p49 = scmp.ne.s32.totalorder %s38, %s41
      %p50 = scmp.eq.s32.totalorder %s33, 1
      %p51 = por %p49, %p50
      %p52 = scmp.ne.s32.totalorder %s41, %s42
      %p53 = scmp.eq.s32.totalorder %s33, 0
      %p54 = por %p52, %p53
      %p55 = scmp.ne.s32.totalorder %s41, %s42
      %p56 = scmp.eq.s32.totalorder %s34, 1
      %p57 = por %p55, %p56
      %p59 = scmp.ne.s32.totalorder %s42, %s58
      %p60 = scmp.eq.s32.totalorder %s34, 0
      %p61 = por %p59, %p60
      %s63 = sadd.s32 %s62, 1
      %p66 = scmp.eq.s32.totalorder %s28, 1
      %p67 = scmp.ne.s32.totalorder %s62, %s64
      %p68 = scmp.eq.s32.totalorder %s28, 0
      %p69 = por %p67, %p68
      %p70 = scmp.ne.s32.totalorder %s62, %s64
      %p71 = scmp.eq.s32.totalorder %s33, 1
      %p72 = por %p70, %p71
      %p73 = scmp.ne.s32.totalorder %s64, %s65
      %p74 = scmp.eq.s32.totalorder %s33, 0
      %p75 = por %p73, %p74
      %p76 = scmp.ne.s32.totalorder %s64, %s65
      %p77 = scmp.eq.s32.totalorder %s34, 1
      %p78 = por %p76, %p77
      %p80 = scmp.ne.s32.totalorder %s65, %s79
      %p81 = scmp.eq.s32.totalorder %s34, 0
      %p82 = por %p80, %p81
      %s84 = sadd.s32 %s83, 1
      %p87 = scmp.eq.s32.totalorder %s28, 1
      %p88 = scmp.ne.s32.totalorder %s83, %s85
      %p89 = scmp.eq.s32.totalorder %s28, 0
      %p90 = por %p88, %p89
      %p91 = scmp.ne.s32.totalorder %s83, %s85
      %p92 = scmp.eq.s32.totalorder %s33, 1
      %p93 = por %p91, %p92
      %p94 = scmp.ne.s32.totalorder %s85, %s86
      %p95 = scmp.eq.s32.totalorder %s33, 0
      %p96 = por %p94, %p95
      %p97 = scmp.ne.s32.totalorder %s85, %s86
      %p98 = scmp.eq.s32.totalorder %s34, 1
      %p99 = por %p97, %p98
      %p101 = scmp.ne.s32.totalorder %s86, %s100
      %p102 = scmp.eq.s32.totalorder %s34, 0
      %p103 = por %p101, %p102
      %s105 = sadd.s32 %s104, 1
      %p108 = scmp.eq.s32.totalorder %s28, 1
      %p109 = scmp.ne.s32.totalorder %s104, %s106
      %p110 = scmp.eq.s32.totalorder %s28, 0
      %p111 = por %p109, %p110
      %p112 = scmp.ne.s32.totalorder %s104, %s106
      %p113 = scmp.eq.s32.totalorder %s33, 1
      %p114 = por %p112, %p113
      %p115 = scmp.ne.s32.totalorder %s106, %s107
      %p116 = scmp.eq.s32.totalorder %s33, 0
      %p117 = por %p115, %p116
      %p118 = scmp.ne.s32.totalorder %s106, %s107
      %p119 = scmp.eq.s32.totalorder %s34, 1
      %p120 = por %p118, %p119
      %p122 = scmp.ne.s32.totalorder %s107, %s121
      %p123 = scmp.eq.s32.totalorder %s34, 0
      %p124 = por %p122, %p123
      %s126 = sadd.s32 %s125, 1
      %p129 = scmp.eq.s32.totalorder %s28, 1
      %p130 = scmp.ne.s32.totalorder %s125, %s127
      %p131 = scmp.eq.s32.totalorder %s28, 0
      %p132 = por %p130, %p131
      %p133 = scmp.ne.s32.totalorder %s125, %s127
      %p134 = scmp.eq.s32.totalorder %s33, 1
      %p135 = por %p133, %p134
      %p136 = scmp.ne.s32.totalorder %s127, %s128
      %p137 = scmp.eq.s32.totalorder %s33, 0
      %p138 = por %p136, %p137
      %p139 = scmp.ne.s32.totalorder %s127, %s128
      %p140 = scmp.eq.s32.totalorder %s34, 1
      %p141 = por %p139, %p140
      %p143 = scmp.ne.s32.totalorder %s128, %s142
      %p144 = scmp.eq.s32.totalorder %s34, 0
      %p145 = por %p143, %p144
      %s147 = sadd.s32 %s146, 1
      %p150 = scmp.eq.s32.totalorder %s28, 1
      %p151 = scmp.ne.s32.totalorder %s146, %s148
      %p152 = scmp.eq.s32.totalorder %s28, 0
      %p153 = por %p151, %p152
      %p154 = scmp.ne.s32.totalorder %s146, %s148
      %p155 = scmp.eq.s32.totalorder %s33, 1
      %p156 = por %p154, %p155
      %p157 = scmp.ne.s32.totalorder %s148, %s149
      %p158 = scmp.eq.s32.totalorder %s33, 0
      %p159 = por %p157, %p158
      %p160 = scmp.ne.s32.totalorder %s148, %s149
      %p161 = scmp.eq.s32.totalorder %s34, 1
      %p162 = por %p160, %p161
      %p164 = scmp.ne.s32.totalorder %s149, %s163
      %p165 = scmp.eq.s32.totalorder %s34, 0
      %p166 = por %p164, %p165
      %s168 = sadd.s32 %s167, 1
      %p171 = scmp.eq.s32.totalorder %s28, 1
      %p172 = scmp.ne.s32.totalorder %s167, %s169
      %p173 = scmp.eq.s32.totalorder %s28, 0
      %p174 = por %p172, %p173
      %p175 = scmp.ne.s32.totalorder %s167, %s169
      %p176 = scmp.eq.s32.totalorder %s33, 1
      %p177 = por %p175, %p176
      %p178 = scmp.ne.s32.totalorder %s169, %s170
      %p179 = scmp.eq.s32.totalorder %s33, 0
      %p180 = por %p178, %p179
      %p181 = scmp.ne.s32.totalorder %s169, %s170
      %p182 = scmp.eq.s32.totalorder %s34, 1
      %p183 = por %p181, %p182
      %p185 = scmp.ne.s32.totalorder %s170, %s184
      %p186 = scmp.eq.s32.totalorder %s34, 0
      %p187 = por %p185, %p186
      %s189 = sadd.s32 %s188, 1
      %p192 = scmp.eq.s32.totalorder %s28, 1
      %p193 = scmp.ne.s32.totalorder %s188, %s190
      %p194 = scmp.eq.s32.totalorder %s28, 0
      %p195 = por %p193, %p194
      %p196 = scmp.ne.s32.totalorder %s188, %s190
      %p197 = scmp.eq.s32.totalorder %s33, 1
      %p198 = por %p196, %p197
      %p199 = scmp.ne.s32.totalorder %s190, %s191
      %p200 = scmp.eq.s32.totalorder %s33, 0
      %p201 = por %p199, %p200
      %p202 = scmp.ne.s32.totalorder %s190, %s191
      %p203 = scmp.eq.s32.totalorder %s34, 1
      %p204 = por %p202, %p203
      %p206 = scmp.ne.s32.totalorder %s191, %s205
      %p207 = scmp.eq.s32.totalorder %s34, 0
      %p208 = por %p206, %p207
      %s210 = sadd.s32 %s209, 1
      %p213 = scmp.eq.s32.totalorder %s28, 1
      %p214 = scmp.ne.s32.totalorder %s209, %s211
      %p215 = scmp.eq.s32.totalorder %s28, 0
      %p216 = por %p214, %p215
      %p217 = scmp.ne.s32.totalorder %s209, %s211
      %p218 = scmp.eq.s32.totalorder %s33, 1
      %p219 = por %p217, %p218
      %p220 = scmp.ne.s32.totalorder %s211, %s212
      %p221 = scmp.eq.s32.totalorder %s33, 0
      %p222 = por %p220, %p221
      %p223 = scmp.ne.s32.totalorder %s211, %s212
      %p224 = scmp.eq.s32.totalorder %s34, 1
      %p225 = por %p223, %p224
      %p227 = scmp.ne.s32.totalorder %s212, %s226
      %p228 = scmp.eq.s32.totalorder %s34, 0
      %p229 = por %p227, %p228
      %s231 = sadd.s32 %s230, 1
      %p234 = scmp.eq.s32.totalorder %s28, 1
      %p235 = scmp.ne.s32.totalorder %s230, %s232
      %p236 = scmp.eq.s32.totalorder %s28, 0
      %p237 = por %p235, %p236
      %p238 = scmp.ne.s32.totalorder %s230, %s232
      %p239 = scmp.eq.s32.totalorder %s33, 1
      %p240 = por %p238, %p239
      %p241 = scmp.ne.s32.totalorder %s232, %s233
      %p242 = scmp.eq.s32.totalorder %s33, 0
      %p243 = por %p241, %p242
      %p244 = scmp.ne.s32.totalorder %s232, %s233
      %p245 = scmp.eq.s32.totalorder %s34, 1
      %p246 = por %p244, %p245
      %p248 = scmp.ne.s32.totalorder %s233, %s247
      %p249 = scmp.eq.s32.totalorder %s34, 0
      %p250 = por %p248, %p249
      %s252 = sadd.s32 %s251, 1
      %p255 = scmp.eq.s32.totalorder %s28, 1
      %p256 = scmp.ne.s32.totalorder %s251, %s253
      %p257 = scmp.eq.s32.totalorder %s28, 0
      %p258 = por %p256, %p257
      %p259 = scmp.ne.s32.totalorder %s251, %s253
      %p260 = scmp.eq.s32.totalorder %s33, 1
      %p261 = por %p259, %p260
      %p262 = scmp.ne.s32.totalorder %s253, %s254
      %p263 = scmp.eq.s32.totalorder %s33, 0
      %p264 = por %p262, %p263
      %p265 = scmp.ne.s32.totalorder %s253, %s254
      %p266 = scmp.eq.s32.totalorder %s34, 1
      %p267 = por %p265, %p266
      %p269 = scmp.ne.s32.totalorder %s254, %s268
      %p270 = scmp.eq.s32.totalorder %s34, 0
      %p271 = por %p269, %p270
      %s273 = sadd.s32 %s272, 1
      %p276 = scmp.eq.s32.totalorder %s28, 1
      %p277 = scmp.ne.s32.totalorder %s272, %s274
      %p278 = scmp.eq.s32.totalorder %s28, 0
      %p279 = por %p277, %p278
      %p280 = scmp.ne.s32.totalorder %s272, %s274
      %p281 = scmp.eq.s32.totalorder %s33, 1
      %p282 = por %p280, %p281
      %p283 = scmp.ne.s32.totalorder %s274, %s275
      %p284 = scmp.eq.s32.totalorder %s33, 0
      %p285 = por %p283, %p284
      %p286 = scmp.ne.s32.totalorder %s274, %s275
      %p287 = scmp.eq.s32.totalorder %s34, 1
      %p288 = por %p286, %p287
      %p290 = scmp.ne.s32.totalorder %s275, %s289
      %p291 = scmp.eq.s32.totalorder %s34, 0
      %p292 = por %p290, %p291
      %s294 = sadd.s32 %s293, 1
      %p297 = scmp.eq.s32.totalorder %s28, 1
      %p298 = scmp.ne.s32.totalorder %s293, %s295
      %p299 = scmp.eq.s32.totalorder %s28, 0
      %p300 = por %p298, %p299
      %p301 = scmp.ne.s32.totalorder %s293, %s295
      %p302 = scmp.eq.s32.totalorder %s33, 1
      %p303 = por %p301, %p302
      %p304 = scmp.ne.s32.totalorder %s295, %s296
      %p305 = scmp.eq.s32.totalorder %s33, 0
      %p306 = por %p304, %p305
      %p307 = scmp.ne.s32.totalorder %s295, %s296
      %p308 = scmp.eq.s32.totalorder %s34, 1
      %p309 = por %p307, %p308
      %p311 = scmp.ne.s32.totalorder %s296, %s310
      %p312 = scmp.eq.s32.totalorder %s34, 0
      %p313 = por %p311, %p312
      %s315 = sadd.s32 %s314, 1
      %p318 = scmp.eq.s32.totalorder %s28, 1
      %p319 = scmp.ne.s32.totalorder %s314, %s316
      %p320 = scmp.eq.s32.totalorder %s28, 0
      %p321 = por %p319, %p320
      %p322 = scmp.ne.s32.totalorder %s314, %s316
      %p323 = scmp.eq.s32.totalorder %s33, 1
      %p324 = por %p322, %p323
      %p325 = scmp.ne.s32.totalorder %s316, %s317
      %p326 = scmp.eq.s32.totalorder %s33, 0
      %p327 = por %p325, %p326
      %p328 = scmp.ne.s32.totalorder %s316, %s317
      %p329 = scmp.eq.s32.totalorder %s34, 1
      %p330 = por %p328, %p329
      %p332 = scmp.ne.s32.totalorder %s317, %s331
      %p333 = scmp.eq.s32.totalorder %s34, 0
      %p334 = por %p332, %p333
      %s336 = sadd.s32 %s335, 1
      %p339 = scmp.eq.s32.totalorder %s28, 1
      %p340 = scmp.ne.s32.totalorder %s335, %s337
      %p341 = scmp.eq.s32.totalorder %s28, 0
      %p342 = por %p340, %p341
      %p343 = scmp.ne.s32.totalorder %s335, %s337
      %p344 = scmp.eq.s32.totalorder %s33, 1
      %p345 = por %p343, %p344
      %p346 = scmp.ne.s32.totalorder %s337, %s338
      %p347 = scmp.eq.s32.totalorder %s33, 0
      %p348 = por %p346, %p347
      %p349 = scmp.ne.s32.totalorder %s337, %s338
      %p350 = scmp.eq.s32.totalorder %s34, 1
      %p351 = por %p349, %p350
      %p353 = scmp.ne.s32.totalorder %s338, %s352
      %p354 = scmp.eq.s32.totalorder %s34, 0
      %p355 = por %p353, %p354
      %s357 = sadd.s32 %s356, 1
      %p360 = scmp.eq.s32.totalorder %s28, 1
      %p361 = scmp.ne.s32.totalorder %s356, %s358
      %p362 = scmp.eq.s32.totalorder %s28, 0
      %p363 = por %p361, %p362
      %p364 = scmp.ne.s32.totalorder %s356, %s358
      %p365 = scmp.eq.s32.totalorder %s33, 1
      %p366 = por %p364, %p365
      %p367 = scmp.ne.s32.totalorder %s358, %s359
      %p368 = scmp.eq.s32.totalorder %s33, 0
      %p369 = por %p367, %p368
      %p370 = scmp.ne.s32.totalorder %s358, %s359
      %p371 = scmp.eq.s32.totalorder %s34, 1
      %p372 = por %p370, %p371
      %p374 = scmp.ne.s32.totalorder %s359, %s373
      %p375 = scmp.eq.s32.totalorder %s34, 0
      %p376 = por %p374, %p375
      %s378 = sadd.s32 %s377, 1
      %p381 = scmp.eq.s32.totalorder %s28, 1
      %p382 = scmp.ne.s32.totalorder %s377, %s379
      %p383 = scmp.eq.s32.totalorder %s28, 0
      %p384 = por %p382, %p383
      %p385 = scmp.ne.s32.totalorder %s377, %s379
      %p386 = scmp.eq.s32.totalorder %s33, 1
      %p387 = por %p385, %p386
      %p388 = scmp.ne.s32.totalorder %s379, %s380
      %p389 = scmp.eq.s32.totalorder %s33, 0
      %p390 = por %p388, %p389
      %p391 = scmp.ne.s32.totalorder %s379, %s380
      %p392 = scmp.eq.s32.totalorder %s34, 1
      %p393 = por %p391, %p392
      %p395 = scmp.ne.s32.totalorder %s380, %s394
      %p396 = scmp.eq.s32.totalorder %s34, 0
      %p397 = por %p395, %p396
      %s398 = ssub.s32 %s28, %s35
      %p399 = scmp.eq.s32.totalorder %s398, 0
      %s401 = sadd.s32 %s400, 1
      %s402 = scalar_select %p399, %s400, %s401
      %p405 = pneg %p399
      %p406 = scmp.eq.s32.totalorder %s28, 1
      %p407 = por %p405, %p406
      %p408 = scmp.ne.s32.totalorder %s400, %s403
      %p409 = scmp.eq.s32.totalorder %s28, 0
      %p410 = por %p408, %p409
      %p411 = scmp.ne.s32.totalorder %s400, %s403
      %p412 = scmp.eq.s32.totalorder %s33, 1
      %p413 = por %p411, %p412
      %p414 = scmp.ne.s32.totalorder %s403, %s404
      %p415 = scmp.eq.s32.totalorder %s33, 0
      %p416 = por %p414, %p415
      %p417 = scmp.ne.s32.totalorder %s403, %s404
      %p418 = scmp.eq.s32.totalorder %s34, 1
      %p419 = por %p417, %p418
      %p421 = scmp.ne.s32.totalorder %s404, %s420
      %p422 = scmp.eq.s32.totalorder %s34, 0
      %p423 = por %p421, %p422
      %p424 = scmp.le.s32.totalorder 1, %s28
      %p425 = scmp.lt.s32.totalorder %s28, 3
      %p426 = pnand %p424, %p425
      %p427 = pneg %p426
      // Predicated region
      $region9: #{tpu_custom_call.1} parent=5 // pred_check
        _
      $region10: #{tpu_custom_call.1} parent=5 // pred_check_branch
        %429 = sbr.rel (%p426) target = $region12
      $region11: #{tpu_custom_call.1} parent=5 // pred_region
        %s430 = ssub.s32 %s28, 1
        // Predicated region
        $region13: #{tpu_custom_call.1} parent=11 // pred_check
          %p431 = pneg %p75
        $region14: #{tpu_custom_call.1} parent=11 // pred_check_branch
          %433 = sbr.rel (%p431) target = $region16
        $region15: #{tpu_custom_call.1} parent=11 // pred_region
          %435 = vsyncadd [#allocation3], 0
          %s437 = sshll.u32 %s1, 4
          %s438 = int_to_ptr.hbm [resolvable:$true] %s437
          %s439 = sshll.u32 [#allocation2], 4
          %s440 = int_to_ptr.vmem [resolvable:$true] %s439
          %442 = dma.hbm_to_vmem [thread:$0]  %s438, 16, %s440, [#allocation3]
        $region16: #{tpu_custom_call.1} parent=11 // pred_fallthru
          _
        // Predicated region
        $region17: #{tpu_custom_call.1} parent=11 // pred_check
          %p443 = pneg %p96
        $region18: #{tpu_custom_call.1} parent=11 // pred_check_branch
          %445 = sbr.rel (%p443) target = $region20
        $region19: #{tpu_custom_call.1} parent=11 // pred_region
          _
        $region20: #{tpu_custom_call.1} parent=11 // pred_fallthru
          _
        // Predicated region
        $region21: #{tpu_custom_call.1} parent=11 // pred_check
          %p446 = pneg %p117
        $region22: #{tpu_custom_call.1} parent=11 // pred_check_branch
          %448 = sbr.rel (%p446) target = $region24
        $region23: #{tpu_custom_call.1} parent=11 // pred_region
          _
        $region24: #{tpu_custom_call.1} parent=11 // pred_fallthru
          _
        // Predicated region
        $region25: #{tpu_custom_call.1} parent=11 // pred_check
          %p449 = pneg %p138
        $region26: #{tpu_custom_call.1} parent=11 // pred_check_branch
          %451 = sbr.rel (%p449) target = $region28
        $region27: #{tpu_custom_call.1} parent=11 // pred_region
          _
        $region28: #{tpu_custom_call.1} parent=11 // pred_fallthru
          _
        // Predicated region
        $region29: #{tpu_custom_call.1} parent=11 // pred_check
          %p452 = pneg %p159
        $region30: #{tpu_custom_call.1} parent=11 // pred_check_branch
          %454 = sbr.rel (%p452) target = $region32
        $region31: #{tpu_custom_call.1} parent=11 // pred_region
          _
        $region32: #{tpu_custom_call.1} parent=11 // pred_fallthru
          _
        // Predicated region
        $region33: #{tpu_custom_call.1} parent=11 // pred_check
          %p455 = pneg %p180
        $region34: #{tpu_custom_call.1} parent=11 // pred_check_branch
          %457 = sbr.rel (%p455) target = $region36
        $region35: #{tpu_custom_call.1} parent=11 // pred_region
          _
        $region36: #{tpu_custom_call.1} parent=11 // pred_fallthru
          _
        // Predicated region
        $region37: #{tpu_custom_call.1} parent=11 // pred_check
          %p458 = pneg %p201
        $region38: #{tpu_custom_call.1} parent=11 // pred_check_branch
          %460 = sbr.rel (%p458) target = $region40
        $region39: #{tpu_custom_call.1} parent=11 // pred_region
          _
        $region40: #{tpu_custom_call.1} parent=11 // pred_fallthru
          _
        // Predicated region
        $region41: #{tpu_custom_call.1} parent=11 // pred_check
          %p461 = pneg %p222
        $region42: #{tpu_custom_call.1} parent=11 // pred_check_branch
          %463 = sbr.rel (%p461) target = $region44
        $region43: #{tpu_custom_call.1} parent=11 // pred_region
          _
        $region44: #{tpu_custom_call.1} parent=11 // pred_fallthru
          _
        // Predicated region
        $region45: #{tpu_custom_call.1} parent=11 // pred_check
          %p464 = pneg %p243
        $region46: #{tpu_custom_call.1} parent=11 // pred_check_branch
          %466 = sbr.rel (%p464) target = $region48
        $region47: #{tpu_custom_call.1} parent=11 // pred_region
          _
        $region48: #{tpu_custom_call.1} parent=11 // pred_fallthru
          _
        // Predicated region
        $region49: #{tpu_custom_call.1} parent=11 // pred_check
          %p467 = pneg %p264
        $region50: #{tpu_custom_call.1} parent=11 // pred_check_branch
          %469 = sbr.rel (%p467) target = $region52
        $region51: #{tpu_custom_call.1} parent=11 // pred_region
          _
        $region52: #{tpu_custom_call.1} parent=11 // pred_fallthru
          _
        // Predicated region
        $region53: #{tpu_custom_call.1} parent=11 // pred_check
          %p470 = pneg %p285
        $region54: #{tpu_custom_call.1} parent=11 // pred_check_branch
          %472 = sbr.rel (%p470) target = $region56
        $region55: #{tpu_custom_call.1} parent=11 // pred_region
          _
        $region56: #{tpu_custom_call.1} parent=11 // pred_fallthru
          _
        // Predicated region
        $region57: #{tpu_custom_call.1} parent=11 // pred_check
          %p473 = pneg %p306
        $region58: #{tpu_custom_call.1} parent=11 // pred_check_branch
          %475 = sbr.rel (%p473) target = $region60
        $region59: #{tpu_custom_call.1} parent=11 // pred_region
          _
        $region60: #{tpu_custom_call.1} parent=11 // pred_fallthru
          _
        // Predicated region
        $region61: #{tpu_custom_call.1} parent=11 // pred_check
          %p476 = pneg %p327
        $region62: #{tpu_custom_call.1} parent=11 // pred_check_branch
          %478 = sbr.rel (%p476) target = $region64
        $region63: #{tpu_custom_call.1} parent=11 // pred_region
          %480 = vsyncadd [#allocation6], 0
          %s481 = sshll.u32 %s13, 4
          %s482 = int_to_ptr.hbm [resolvable:$true] %s481
          %s483 = sshll.u32 [#allocation5], 4
          %s484 = int_to_ptr.vmem [resolvable:$true] %s483
          %489 = dma.hbm_to_vmem [thread:$0]  %s482, 256, %s484, [#allocation6], 64, 64, 4
        $region64: #{tpu_custom_call.1} parent=11 // pred_fallthru
          _
        // Predicated region
        $region65: #{tpu_custom_call.1} parent=11 // pred_check
          %p490 = pneg %p348
        $region66: #{tpu_custom_call.1} parent=11 // pred_check_branch
          %492 = sbr.rel (%p490) target = $region68
        $region67: #{tpu_custom_call.1} parent=11 // pred_region
          _
        $region68: #{tpu_custom_call.1} parent=11 // pred_fallthru
          _
        // Predicated region
        $region69: #{tpu_custom_call.1} parent=11 // pred_check
          %p493 = pneg %p369
        $region70: #{tpu_custom_call.1} parent=11 // pred_check_branch
          %495 = sbr.rel (%p493) target = $region72
        $region71: #{tpu_custom_call.1} parent=11 // pred_region
          _
        $region72: #{tpu_custom_call.1} parent=11 // pred_fallthru
          _
        // Predicated region
        $region73: #{tpu_custom_call.1} parent=11 // pred_check
          %p496 = pneg %p390
        $region74: #{tpu_custom_call.1} parent=11 // pred_check_branch
          %498 = sbr.rel (%p496) target = $region76
        $region75: #{tpu_custom_call.1} parent=11 // pred_region
          _
        $region76: #{tpu_custom_call.1} parent=11 // pred_fallthru
          _
      $region12: #{tpu_custom_call.1} parent=5 // pred_fallthru
        _
      %p499 = scmp.lt.s32.totalorder %s28, 2
      // Predicated region
      $region77: #{tpu_custom_call.1} parent=5 // pred_check
        %p500 = pneg %p499
      $region78: #{tpu_custom_call.1} parent=5 // pred_check_branch
        %502 = sbr.rel (%p500) target = $region80
      $region79: #{tpu_custom_call.1} parent=5 // pred_region
        // Predicated region
        $region81: #{tpu_custom_call.1} parent=79 // pred_check
          %p503 = pneg %p48
        $region82: #{tpu_custom_call.1} parent=79 // pred_check_branch
          %505 = sbr.rel (%p503) target = $region84
        $region83: #{tpu_custom_call.1} parent=79 // pred_region
          %p506 = scmp.lt.s32.totalorder %s28, 1
          %s507 = scalar_select %p506, %s28, 1
          %s508 = smul.addr %s507, 8
          %s509 = scalar_lea.vmem %s0, %s508
        $region84: #{tpu_custom_call.1} parent=79 // pred_fallthru
          _
      $region80: #{tpu_custom_call.1} parent=5 // pred_fallthru
        _
      %p510 = scmp.le.s32.totalorder 1, %s28
      %p511 = scmp.lt.s32.totalorder %s28, 3
      %p512 = pnand %p510, %p511
      %p513 = pneg %p512
      // Predicated region
      $region85: #{tpu_custom_call.1} parent=5 // pred_check
        _
      $region86: #{tpu_custom_call.1} parent=5 // pred_check_branch
        %515 = sbr.rel (%p512) target = $region88
      $region87: #{tpu_custom_call.1} parent=5 // pred_region
        %s516 = ssub.s32 %s28, 1
        // Predicated region
        $region89: #{tpu_custom_call.1} parent=87 // pred_check
          %p517 = pneg %p75
        $region90: #{tpu_custom_call.1} parent=87 // pred_check_branch
          %519 = sbr.rel (%p517) target = $region92
        $region91: #{tpu_custom_call.1} parent=87 // pred_region
          %521 = dma.done [#allocation3], 16
        $region92: #{tpu_custom_call.1} parent=87 // pred_fallthru
          _
        // Predicated region
        $region93: #{tpu_custom_call.1} parent=87 // pred_check
          %p522 = pneg %p327
        $region94: #{tpu_custom_call.1} parent=87 // pred_check_branch
          %524 = sbr.rel (%p522) target = $region96
        $region95: #{tpu_custom_call.1} parent=87 // pred_region
          %526 = dma.done [#allocation6], 256
        $region96: #{tpu_custom_call.1} parent=87 // pred_fallthru
          _
        %p527 = scmp.lt.s32.totalorder %s33, 1
        %s528 = scalar_select %p527, %s33, 1
        %s529 = smul.addr %s528, 8
        %s530 = scalar_lea.vmem %s0, %s529
        %p531 = pneg %p54
        %p532 = pneg %p51
        %p533 = pneg %p75
        %p534 = pneg %p72
        %p535 = pneg %p96
        %p536 = pneg %p93
        %p537 = pneg %p117
        %p538 = pneg %p114
        %p539 = pneg %p138
        %p540 = pneg %p135
        %p541 = pneg %p159
        %p542 = pneg %p156
        %p543 = pneg %p180
        %p544 = pneg %p177
        %p545 = pneg %p201
        %p546 = pneg %p198
        %p547 = pneg %p222
        %p548 = pneg %p219
        %p549 = pneg %p243
        %p550 = pneg %p240
        %p551 = pneg %p264
        %p552 = pneg %p261
        %p553 = pneg %p285
        %p554 = pneg %p282
        %p555 = pneg %p306
        %p556 = pneg %p303
        %p557 = pneg %p327
        %p558 = pneg %p324
        %p559 = pneg %p348
        %p560 = pneg %p345
        %p561 = pneg %p369
        %p562 = pneg %p366
        %p563 = pneg %p390
        %p564 = pneg %p387
        %p565 = pneg %p416
        %p566 = pneg %p413
        %s567 = sand.u32 %s403, 1
        %s568 = scalar_lea.sflag [#allocation4], %s567
        %s569 = sand.u32 %s403, 1
        %s570 = smul.addr %s569, 8
        %s571 = scalar_lea.vmem [#allocation7], %s570
        %p572 = scmp.lt.s32.totalorder %s33, 1
        %s573 = scalar_select %p572, %s33, 1
        %s574 = smul.addr %s573, 8
        %s575 = scalar_lea.vmem %s0, %s574
        %v577 = vld [vmem:[%s575] sm:$0xff]
        %v578 = vld [vmem:[#allocation2] sm:$0x1]
        %v579 = vld [vmem:[%s2] sm:$0x1]
        %vm580 = vcmask 261120
        %v581 = vsel %vm580, %v577, 0.0
        %582 = vadd.xlane.f32.xlu0 %v581
        %v583 = vpop.xlane.xlu0 %582
        %v584 = vrcp.pop 32.0
        %v585 = vmul.f32 32.0, %v584
        %v586 = vsub.f32 1.0, %v585
        %v587 = vmul.f32 %v584, %v586
        %v588 = vadd.f32 %v584, %v587
        %vm589 = vweird.f32 %v584
        %v590 = vsel %vm589, %v584, %v588
        %v591 = vmul.f32 %v583, %v590
        %v592 = vmul.f32 %v577, %v577
        %v593 = vsel %vm580, %v592, 0.0
        %594 = vadd.xlane.f32.xlu0 %v593
        %v595 = vpop.xlane.xlu0 %594
        %v596 = vmul.f32 %v595, %v590
        %v597 = vmul.f32 %v591, %v591
        %v598 = vsub.f32 %v596, %v597
        %v599 = vsub.f32 %v577, %v591
        %v600 = vadd.f32 %v598, 1e-05
        %v601 = vrsqrt.pop %v600
        %v602 = vmul.f32 %v601, %v600
        %v603 = vmul.f32 %v602, %v601
        %v604 = vmul.f32 0.5, %v603
        %v605 = vsub.f32 1.5, %v604
        %v606 = vmul.f32 %v601, %v605
        %vm607 = vweird.f32 %v600
        %vm608 = vweird.f32 %v601
        %vm609 = vmor %vm607, %vm608
        %v610 = vsel %vm609, %v601, %v606
        %v611 = vmul.f32 %v599, %v610
        %v613 = vperm.slane %v578, 0
        %v615 = vmul.f32 %v611, %v613
        %v617 = vperm.slane %v579, 0
        %v619 = vadd.f32 %v615, %v617
        %v620 = vpack.c.bf16 %v619, %v619
        %v621 = vld [vmem:[%s3] sm:$0xf]
        %v622 = vld [vmem:[%s3 + $0x4] sm:$0xf]
        %v623 = vld [vmem:[%s3 + $0x8] sm:$0xf]
        %v624 = vld [vmem:[%s3 + $0xc] sm:$0xf]
        %v625 = vld [vmem:[%s6] sm:$0x1]
        %v627 = vperm.slane %v625, 0
        %v633 = vunpack.c.l.b16 %v621
        %v634 = vunpack.c.l.b16 %v622
        %v635 = vunpack.c.l.b16 %v623
        %v636 = vunpack.c.l.b16 %v624
        %v637 = vpack.c.b16 %v634, %v633
        %v638 = vpack.c.b16 %v636, %v635
        %v642 = vsel %vm580, %v620, 0
        %644 = vmatpush.bf16.msra.mxu0 0
        %645 = vmatpush.bf16.msra.mxu0 0
        %646 = vmatpush.bf16.msra.mxu0 0
        %647 = vmatpush.bf16.msra.mxu0 0
        %648 = vmatpush.bf16.msra.mxu0 0
        %649 = vmatpush.bf16.msra.mxu0 0
        %650 = vmatpush.bf16.msra.mxu0 %v638
        %651 = vmatpush.bf16.msra.mxu0 %v637
        %652 = vmatmul.bf16.gmra.mxu0 %v642
        %v653 = vpop.f32.mrf.mxu0
        %v654 = vadd.f32 %v627, %v653
        %v655 = vpop.f32.mrf.mxu0
        %656 = vdwg.mxu0
        %v657 = vld [vmem:[%s4] sm:$0xf]
        %v658 = vld [vmem:[%s4 + $0x4] sm:$0xf]
        %v659 = vld [vmem:[%s4 + $0x8] sm:$0xf]
        %v660 = vld [vmem:[%s4 + $0xc] sm:$0xf]
        %v661 = vld [vmem:[%s7] sm:$0x1]
        %v663 = vperm.slane %v661, 0
        %v669 = vunpack.c.l.b16 %v657
        %v670 = vunpack.c.l.b16 %v658
        %v671 = vunpack.c.l.b16 %v659
        %v672 = vunpack.c.l.b16 %v660
        %v673 = vpack.c.b16 %v670, %v669
        %v674 = vpack.c.b16 %v672, %v671
        %677 = vmatpush.bf16.msra.mxu0 0
        %678 = vmatpush.bf16.msra.mxu0 0
        %679 = vmatpush.bf16.msra.mxu0 0
        %680 = vmatpush.bf16.msra.mxu0 0
        %681 = vmatpush.bf16.msra.mxu0 0
        %682 = vmatpush.bf16.msra.mxu0 0
        %683 = vmatpush.bf16.msra.mxu0 %v674
        %684 = vmatpush.bf16.msra.mxu0 %v673
        %685 = vmatmul.bf16.gmra.mxu0 %v642
        %v686 = vpop.f32.mrf.mxu0
        %v687 = vadd.f32 %v663, %v686
        %v688 = vpop.f32.mrf.mxu0
        %689 = vdwg.mxu0
        %v690 = vld [vmem:[%s5] sm:$0xf]
        %v691 = vld [vmem:[%s5 + $0x4] sm:$0xf]
        %v692 = vld [vmem:[%s5 + $0x8] sm:$0xf]
        %v693 = vld [vmem:[%s5 + $0xc] sm:$0xf]
        %v694 = vld [vmem:[%s8] sm:$0x1]
        %v696 = vperm.slane %v694, 0
        %v702 = vunpack.c.l.b16 %v690
        %v703 = vunpack.c.l.b16 %v691
        %v704 = vunpack.c.l.b16 %v692
        %v705 = vunpack.c.l.b16 %v693
        %v706 = vpack.c.b16 %v703, %v702
        %v707 = vpack.c.b16 %v705, %v704
        %710 = vmatpush.bf16.msra.mxu0 0
        %711 = vmatpush.bf16.msra.mxu0 0
        %712 = vmatpush.bf16.msra.mxu0 0
        %713 = vmatpush.bf16.msra.mxu0 0
        %714 = vmatpush.bf16.msra.mxu0 0
        %715 = vmatpush.bf16.msra.mxu0 0
        %716 = vmatpush.bf16.msra.mxu0 %v707
        %717 = vmatpush.bf16.msra.mxu0 %v706
        %718 = vmatmul.bf16.gmra.mxu0 %v642
        %v719 = vpop.f32.mrf.mxu0
        %v720 = vadd.f32 %v696, %v719
        %v721 = vpop.f32.mrf.mxu0
        %722 = vdwg.mxu0
        %v723 = vmul.f32 %v654, 0.35355338
        %725 = vrot.lane.b32.xlu0 %v723, 120
        %v726 = vpop.permute.xlu0 %725
        %728 = vrot.lane.b32.xlu0 %v723, 112
        %v729 = vpop.permute.xlu0 %728
        %731 = vrot.lane.b32.xlu0 %v723, 104
        %v732 = vpop.permute.xlu0 %731
        %v734 = vrot.slane %v729, 4
        %vm735 = vcmask 1047556
        %v736 = vsel %vm735, %v734, %v723
        %v737 = vrot.slane %v723, 4
        %v738 = vsel %vm735, %v729, %v737
        %v740 = vunpack.c.l.s4 1983009808
        %v741 = vunpack.c.0.s8 %v740
        %v742 = vperm.slane %v736, %v741
        %v744 = vunpack.c.l.s4 1983009808
        %v745 = vunpack.c.0.s8 %v744
        %v746 = vperm.slane %v738, %v745
        %v747 = vrot.slane %v732, 4
        %v748 = vsel %vm735, %v747, %v726
        %v749 = vrot.slane %v726, 4
        %v750 = vsel %vm735, %v732, %v749
        %v752 = vunpack.c.l.s4 1983009808
        %v753 = vunpack.c.0.s8 %v752
        %v754 = vperm.slane %v748, %v753
        %v756 = vunpack.c.l.s4 1983009808
        %v757 = vunpack.c.0.s8 %v756
        %v758 = vperm.slane %v750, %v757
        %v759 = vrot.slane %v754, 4
        %v760 = vsel %vm735, %v759, %v742
        %v761 = vrot.slane %v742, 4
        %v762 = vsel %vm735, %v754, %v761
        %v764 = vunpack.c.l.s4 1934713408
        %v765 = vunpack.c.0.s8 %v764
        %v766 = vperm.slane %v760, %v765
        %v768 = vunpack.c.l.s4 1934713408
        %v769 = vunpack.c.0.s8 %v768
        %v770 = vperm.slane %v762, %v769
        %v771 = vrot.slane %v758, 4
        %v772 = vsel %vm735, %v771, %v746
        %v773 = vrot.slane %v746, 4
        %v774 = vsel %vm735, %v758, %v773
        %v776 = vunpack.c.l.s4 1934713408
        %v777 = vunpack.c.0.s8 %v776
        %v778 = vperm.slane %v772, %v777
        %v780 = vunpack.c.l.s4 1934713408
        %v781 = vunpack.c.0.s8 %v780
        %v782 = vperm.slane %v774, %v781
        %v783 = vrot.slane %v766, 4
        %v784 = vsel %vm735, 0.0, %v783
        %v785 = vrot.slane %v770, 4
        %v786 = vsel %vm735, 0.0, %v785
        %v787 = vrot.slane %v778, 4
        %v788 = vsel %vm735, 0.0, %v787
        %v789 = vrot.slane %v782, 4
        %v790 = vsel %vm735, 0.0, %v789
        %v791 = vpack.c.bf16 %v766, %v766
        %v792 = vpack.c.bf16 %v784, %v784
        %v793 = vpack.c.bf16 %v770, %v770
        %v794 = vpack.c.bf16 %v786, %v786
        %v795 = vpack.c.bf16 %v778, %v778
        %v796 = vpack.c.bf16 %v788, %v788
        %v797 = vpack.c.bf16 %v782, %v782
        %v798 = vpack.c.bf16 %v790, %v790
        %v799 = vrot.slane %v795, 4
        %vm800 = vcmask 1047556
        %v801 = vsel %vm800, %v799, %v791
        %v803 = vunpack.c.l.s4 1983009808
        %v804 = vunpack.c.0.s8 %v803
        %v805 = vperm.slane %v801, %v804
        %v806 = vrot.slane %v797, 4
        %v807 = vsel %vm800, %v806, %v793
        %v809 = vunpack.c.l.s4 1983009808
        %v810 = vunpack.c.0.s8 %v809
        %v811 = vperm.slane %v807, %v810
        %v812 = vrot.slane %v811, 4
        %v813 = vsel %vm800, %v812, %v805
        %v815 = vunpack.c.l.s4 1934713408
        %v816 = vunpack.c.0.s8 %v815
        %v817 = vperm.slane %v813, %v816
        %v818 = vrot.slane %v817, 4
        %v819 = vsel %vm800, 0, %v818
        %v820 = vrot.slane %v796, 4
        %v821 = vsel %vm800, %v820, %v792
        %v823 = vunpack.c.l.s4 1983009808
        %v824 = vunpack.c.0.s8 %v823
        %v825 = vperm.slane %v821, %v824
        %v826 = vrot.slane %v798, 4
        %v827 = vsel %vm800, %v826, %v794
        %v829 = vunpack.c.l.s4 1983009808
        %v830 = vunpack.c.0.s8 %v829
        %v831 = vperm.slane %v827, %v830
        %v832 = vrot.slane %v831, 4
        %v833 = vsel %vm800, %v832, %v825
        %v835 = vunpack.c.l.s4 1934713408
        %v836 = vunpack.c.0.s8 %v835
        %v837 = vperm.slane %v833, %v836
        %v838 = vrot.slane %v837, 4
        %v839 = vsel %vm800, 0, %v838
        %v842 = vpack.i.b16 %v837, %v817
        %v843 = vshrl.u32 %v817, 16
        %v844 = vshrl.u32 %v837, 16
        %v845 = vpack.i.b16 %v844, %v843
        %v848 = vpack.i.b16 %v839, %v819
        %v849 = vshrl.u32 %v819, 16
        %v850 = vshrl.u32 %v839, 16
        %v851 = vpack.i.b16 %v850, %v849
        %853 = vrot.lane.b32.xlu0 %v687, 120
        %v854 = vpop.permute.xlu0 %853
        %856 = vrot.lane.b32.xlu0 %v687, 112
        %v857 = vpop.permute.xlu0 %856
        %859 = vrot.lane.b32.xlu0 %v687, 104
        %v860 = vpop.permute.xlu0 %859
        %v862 = vrot.slane %v857, 4
        %v863 = vsel %vm735, %v862, %v687
        %v864 = vrot.slane %v687, 4
        %v865 = vsel %vm735, %v857, %v864
        %v867 = vunpack.c.l.s4 1983009808
        %v868 = vunpack.c.0.s8 %v867
        %v869 = vperm.slane %v863, %v868
        %v871 = vunpack.c.l.s4 1983009808
        %v872 = vunpack.c.0.s8 %v871
        %v873 = vperm.slane %v865, %v872
        %v874 = vrot.slane %v860, 4
        %v875 = vsel %vm735, %v874, %v854
        %v876 = vrot.slane %v854, 4
        %v877 = vsel %vm735, %v860, %v876
        %v879 = vunpack.c.l.s4 1983009808
        %v880 = vunpack.c.0.s8 %v879
        %v881 = vperm.slane %v875, %v880
        %v883 = vunpack.c.l.s4 1983009808
        %v884 = vunpack.c.0.s8 %v883
        %v885 = vperm.slane %v877, %v884
        %v886 = vrot.slane %v881, 4
        %v887 = vsel %vm735, %v886, %v869
        %v888 = vrot.slane %v869, 4
        %v889 = vsel %vm735, %v881, %v888
        %v891 = vunpack.c.l.s4 1934713408
        %v892 = vunpack.c.0.s8 %v891
        %v893 = vperm.slane %v887, %v892
        %v895 = vunpack.c.l.s4 1934713408
        %v896 = vunpack.c.0.s8 %v895
        %v897 = vperm.slane %v889, %v896
        %v898 = vrot.slane %v885, 4
        %v899 = vsel %vm735, %v898, %v873
        %v900 = vrot.slane %v873, 4
        %v901 = vsel %vm735, %v885, %v900
        %v903 = vunpack.c.l.s4 1934713408
        %v904 = vunpack.c.0.s8 %v903
        %v905 = vperm.slane %v899, %v904
        %v907 = vunpack.c.l.s4 1934713408
        %v908 = vunpack.c.0.s8 %v907
        %v909 = vperm.slane %v901, %v908
        %v910 = vrot.slane %v893, 4
        %v911 = vsel %vm735, 0.0, %v910
        %v912 = vrot.slane %v897, 4
        %v913 = vsel %vm735, 0.0, %v912
        %v914 = vrot.slane %v905, 4
        %v915 = vsel %vm735, 0.0, %v914
        %v916 = vrot.slane %v909, 4
        %v917 = vsel %vm735, 0.0, %v916
        %v918 = vpack.c.bf16 %v893, %v893
        %v919 = vpack.c.bf16 %v911, %v911
        %v920 = vpack.c.bf16 %v897, %v897
        %v921 = vpack.c.bf16 %v913, %v913
        %v922 = vpack.c.bf16 %v905, %v905
        %v923 = vpack.c.bf16 %v915, %v915
        %v924 = vpack.c.bf16 %v909, %v909
        %v925 = vpack.c.bf16 %v917, %v917
        %v926 = vrot.slane %v922, 4
        %v927 = vsel %vm800, %v926, %v918
        %v929 = vunpack.c.l.s4 1983009808
        %v930 = vunpack.c.0.s8 %v929
        %v931 = vperm.slane %v927, %v930
        %v932 = vrot.slane %v924, 4
        %v933 = vsel %vm800, %v932, %v920
        %v935 = vunpack.c.l.s4 1983009808
        %v936 = vunpack.c.0.s8 %v935
        %v937 = vperm.slane %v933, %v936
        %v938 = vrot.slane %v937, 4
        %v939 = vsel %vm800, %v938, %v931
        %v941 = vunpack.c.l.s4 1934713408
        %v942 = vunpack.c.0.s8 %v941
        %v943 = vperm.slane %v939, %v942
        %v944 = vrot.slane %v943, 4
        %v945 = vsel %vm800, 0, %v944
        %v946 = vrot.slane %v923, 4
        %v947 = vsel %vm800, %v946, %v919
        %v949 = vunpack.c.l.s4 1983009808
        %v950 = vunpack.c.0.s8 %v949
        %v951 = vperm.slane %v947, %v950
        %v952 = vrot.slane %v925, 4
        %v953 = vsel %vm800, %v952, %v921
        %v955 = vunpack.c.l.s4 1983009808
        %v956 = vunpack.c.0.s8 %v955
        %v957 = vperm.slane %v953, %v956
        %v958 = vrot.slane %v957, 4
        %v959 = vsel %vm800, %v958, %v951
        %v961 = vunpack.c.l.s4 1934713408
        %v962 = vunpack.c.0.s8 %v961
        %v963 = vperm.slane %v959, %v962
        %v964 = vrot.slane %v963, 4
        %v965 = vsel %vm800, 0, %v964
        %v968 = vpack.i.b16 %v963, %v943
        %v969 = vshrl.u32 %v943, 16
        %v970 = vshrl.u32 %v963, 16
        %v971 = vpack.i.b16 %v970, %v969
        %v974 = vpack.i.b16 %v965, %v945
        %v975 = vshrl.u32 %v945, 16
        %v976 = vshrl.u32 %v965, 16
        %v977 = vpack.i.b16 %v976, %v975
        %979 = vrot.lane.b32.xlu0 %v720, 120
        %v980 = vpop.permute.xlu0 %979
        %982 = vrot.lane.b32.xlu0 %v720, 112
        %v983 = vpop.permute.xlu0 %982
        %985 = vrot.lane.b32.xlu0 %v720, 104
        %v986 = vpop.permute.xlu0 %985
        %v988 = vrot.slane %v983, 4
        %v989 = vsel %vm735, %v988, %v720
        %v990 = vrot.slane %v720, 4
        %v991 = vsel %vm735, %v983, %v990
        %v993 = vunpack.c.l.s4 1983009808
        %v994 = vunpack.c.0.s8 %v993
        %v995 = vperm.slane %v989, %v994
        %v997 = vunpack.c.l.s4 1983009808
        %v998 = vunpack.c.0.s8 %v997
        %v999 = vperm.slane %v991, %v998
        %v1000 = vrot.slane %v986, 4
        %v1001 = vsel %vm735, %v1000, %v980
        %v1002 = vrot.slane %v980, 4
        %v1003 = vsel %vm735, %v986, %v1002
        %v1005 = vunpack.c.l.s4 1983009808
        %v1006 = vunpack.c.0.s8 %v1005
        %v1007 = vperm.slane %v1001, %v1006
        %v1009 = vunpack.c.l.s4 1983009808
        %v1010 = vunpack.c.0.s8 %v1009
        %v1011 = vperm.slane %v1003, %v1010
        %v1012 = vrot.slane %v1007, 4
        %v1013 = vsel %vm735, %v1012, %v995
        %v1014 = vrot.slane %v995, 4
        %v1015 = vsel %vm735, %v1007, %v1014
        %v1017 = vunpack.c.l.s4 1934713408
        %v1018 = vunpack.c.0.s8 %v1017
        %v1019 = vperm.slane %v1013, %v1018
        %v1021 = vunpack.c.l.s4 1934713408
        %v1022 = vunpack.c.0.s8 %v1021
        %v1023 = vperm.slane %v1015, %v1022
        %v1024 = vrot.slane %v1011, 4
        %v1025 = vsel %vm735, %v1024, %v999
        %v1026 = vrot.slane %v999, 4
        %v1027 = vsel %vm735, %v1011, %v1026
        %v1029 = vunpack.c.l.s4 1934713408
        %v1030 = vunpack.c.0.s8 %v1029
        %v1031 = vperm.slane %v1025, %v1030
        %v1033 = vunpack.c.l.s4 1934713408
        %v1034 = vunpack.c.0.s8 %v1033
        %v1035 = vperm.slane %v1027, %v1034
        %v1036 = vrot.slane %v1019, 4
        %v1037 = vsel %vm735, 0.0, %v1036
        %v1038 = vrot.slane %v1023, 4
        %v1039 = vsel %vm735, 0.0, %v1038
        %v1040 = vrot.slane %v1031, 4
        %v1041 = vsel %vm735, 0.0, %v1040
        %v1042 = vrot.slane %v1035, 4
        %v1043 = vsel %vm735, 0.0, %v1042
        %v1044 = vpack.c.bf16 %v1019, %v1019
        %v1045 = vpack.c.bf16 %v1037, %v1037
        %v1046 = vpack.c.bf16 %v1023, %v1023
        %v1047 = vpack.c.bf16 %v1039, %v1039
        %v1048 = vpack.c.bf16 %v1031, %v1031
        %v1049 = vpack.c.bf16 %v1041, %v1041
        %v1050 = vpack.c.bf16 %v1035, %v1035
        %v1051 = vpack.c.bf16 %v1043, %v1043
        %v1052 = vrot.slane %v1048, 4
        %v1053 = vsel %vm800, %v1052, %v1044
        %v1055 = vunpack.c.l.s4 1983009808
        %v1056 = vunpack.c.0.s8 %v1055
        %v1057 = vperm.slane %v1053, %v1056
        %v1058 = vrot.slane %v1050, 4
        %v1059 = vsel %vm800, %v1058, %v1046
        %v1061 = vunpack.c.l.s4 1983009808
        %v1062 = vunpack.c.0.s8 %v1061
        %v1063 = vperm.slane %v1059, %v1062
        %v1064 = vrot.slane %v1063, 4
        %v1065 = vsel %vm800, %v1064, %v1057
        %v1067 = vunpack.c.l.s4 1934713408
        %v1068 = vunpack.c.0.s8 %v1067
        %v1069 = vperm.slane %v1065, %v1068
        %v1070 = vrot.slane %v1069, 4
        %v1071 = vsel %vm800, 0, %v1070
        %v1072 = vrot.slane %v1049, 4
        %v1073 = vsel %vm800, %v1072, %v1045
        %v1075 = vunpack.c.l.s4 1983009808
        %v1076 = vunpack.c.0.s8 %v1075
        %v1077 = vperm.slane %v1073, %v1076
        %v1078 = vrot.slane %v1051, 4
        %v1079 = vsel %vm800, %v1078, %v1047
        %v1081 = vunpack.c.l.s4 1983009808
        %v1082 = vunpack.c.0.s8 %v1081
        %v1083 = vperm.slane %v1079, %v1082
        %v1084 = vrot.slane %v1083, 4
        %v1085 = vsel %vm800, %v1084, %v1077
        %v1087 = vunpack.c.l.s4 1934713408
        %v1088 = vunpack.c.0.s8 %v1087
        %v1089 = vperm.slane %v1085, %v1088
        %v1090 = vrot.slane %v1089, 4
        %v1091 = vsel %vm800, 0, %v1090
        %v1094 = vpack.i.b16 %v1089, %v1069
        %v1095 = vshrl.u32 %v1069, 16
        %v1096 = vshrl.u32 %v1089, 16
        %v1097 = vpack.i.b16 %v1096, %v1095
        %v1100 = vpack.i.b16 %v1091, %v1071
        %v1101 = vshrl.u32 %v1071, 16
        %v1102 = vshrl.u32 %v1091, 16
        %v1103 = vpack.i.b16 %v1102, %v1101
        %vm1104 = vcmask 64512
        %v1106 = vsel %vm1104, %v842, 0
        %v1109 = vsel %vm1104, %v968, 0
        %1111 = vmatpush.bf16.xpose.msra.mxu0 0
        %1112 = vmatpush.bf16.xpose.msra.mxu0 0
        %1113 = vmatpush.bf16.xpose.msra.mxu0 0
        %1114 = vmatpush.bf16.xpose.msra.mxu0 0
        %1115 = vmatpush.bf16.xpose.msra.mxu0 0
        %1116 = vmatpush.bf16.xpose.msra.mxu0 0
        %1117 = vmatpush.bf16.xpose.msra.mxu0 0
        %1118 = vmatpush.bf16.xpose.msra.mxu0 %v1109
        %1119 = vmatmul.bf16.gmra.mxu0 %v1106
        %v1120 = vpop.f32.mrf.mxu0
        %v1121 = vadd.f32 0.0, %v1120
        %v1122 = vpop.f32.mrf.mxu0
        %1123 = vdwg.mxu0
        %v1125 = vsel %vm1104, %v845, 0
        %v1128 = vsel %vm1104, %v971, 0
        %1130 = vmatpush.bf16.xpose.msra.mxu0 0
        %1131 = vmatpush.bf16.xpose.msra.mxu0 0
        %1132 = vmatpush.bf16.xpose.msra.mxu0 0
        %1133 = vmatpush.bf16.xpose.msra.mxu0 0
        %1134 = vmatpush.bf16.xpose.msra.mxu0 0
        %1135 = vmatpush.bf16.xpose.msra.mxu0 0
        %1136 = vmatpush.bf16.xpose.msra.mxu0 0
        %1137 = vmatpush.bf16.xpose.msra.mxu0 %v1128
        %1138 = vmatmul.bf16.gmra.mxu0 %v1125
        %v1139 = vpop.f32.mrf.mxu0
        %v1140 = vadd.f32 0.0, %v1139
        %v1141 = vpop.f32.mrf.mxu0
        %1142 = vdwg.mxu0
        %v1144 = vsel %vm1104, %v848, 0
        %v1147 = vsel %vm1104, %v974, 0
        %1149 = vmatpush.bf16.xpose.msra.mxu0 0
        %1150 = vmatpush.bf16.xpose.msra.mxu0 0
        %1151 = vmatpush.bf16.xpose.msra.mxu0 0
        %1152 = vmatpush.bf16.xpose.msra.mxu0 0
        %1153 = vmatpush.bf16.xpose.msra.mxu0 0
        %1154 = vmatpush.bf16.xpose.msra.mxu0 0
        %1155 = vmatpush.bf16.xpose.msra.mxu0 0
        %1156 = vmatpush.bf16.xpose.msra.mxu0 %v1147
        %1157 = vmatmul.bf16.gmra.mxu0 %v1144
        %v1158 = vpop.f32.mrf.mxu0
        %v1159 = vadd.f32 0.0, %v1158
        %v1160 = vpop.f32.mrf.mxu0
        %1161 = vdwg.mxu0
        %v1163 = vsel %vm1104, %v851, 0
        %v1166 = vsel %vm1104, %v977, 0
        %1168 = vmatpush.bf16.xpose.msra.mxu0 0
        %1169 = vmatpush.bf16.xpose.msra.mxu0 0
        %1170 = vmatpush.bf16.xpose.msra.mxu0 0
        %1171 = vmatpush.bf16.xpose.msra.mxu0 0
        %1172 = vmatpush.bf16.xpose.msra.mxu0 0
        %1173 = vmatpush.bf16.xpose.msra.mxu0 0
        %1174 = vmatpush.bf16.xpose.msra.mxu0 0
        %1175 = vmatpush.bf16.xpose.msra.mxu0 %v1166
        %1176 = vmatmul.bf16.gmra.mxu0 %v1163
        %v1177 = vpop.f32.mrf.mxu0
        %v1178 = vadd.f32 0.0, %v1177
        %v1179 = vpop.f32.mrf.mxu0
        %1180 = vdwg.mxu0
        %v1181 = vsel %vm1104, %v1121, -inf
        %1182 = vmax.xlane.f32.xlu0 %v1181
        %v1183 = vpop.xlane.xlu0 %1182
        %v1184 = vsel %vm1104, %v1140, -inf
        %1185 = vmax.xlane.f32.xlu0 %v1184
        %v1186 = vpop.xlane.xlu0 %1185
        %v1187 = vsel %vm1104, %v1159, -inf
        %1188 = vmax.xlane.f32.xlu0 %v1187
        %v1189 = vpop.xlane.xlu0 %1188
        %v1190 = vsel %vm1104, %v1178, -inf
        %1191 = vmax.xlane.f32.xlu0 %v1190
        %v1192 = vpop.xlane.xlu0 %1191
        %v1193 = vsub.f32 %v1121, %v1183
        %v1194 = vsub.f32 %v1140, %v1186
        %v1195 = vsub.f32 %v1159, %v1189
        %v1196 = vsub.f32 %v1178, %v1192
        %v1197 = vmul.f32 %v1193, 1.442695
        %v1198 = vpow.pop %v1197
        %v1199 = vmul.f32 %v1194, 1.442695
        %v1200 = vpow.pop %v1199
        %v1201 = vmul.f32 %v1195, 1.442695
        %v1202 = vpow.pop %v1201
        %v1203 = vmul.f32 %v1196, 1.442695
        %v1204 = vpow.pop %v1203
        %v1205 = vsel %vm1104, %v1198, 0.0
        %1206 = vadd.xlane.f32.xlu0 %v1205
        %v1207 = vpop.xlane.xlu0 %1206
        %v1208 = vsel %vm1104, %v1200, 0.0
        %1209 = vadd.xlane.f32.xlu0 %v1208
        %v1210 = vpop.xlane.xlu0 %1209
        %v1211 = vsel %vm1104, %v1202, 0.0
        %1212 = vadd.xlane.f32.xlu0 %v1211
        %v1213 = vpop.xlane.xlu0 %1212
        %v1214 = vsel %vm1104, %v1204, 0.0
        %1215 = vadd.xlane.f32.xlu0 %v1214
        %v1216 = vpop.xlane.xlu0 %1215
        %v1217 = vrcp.pop %v1207
        %v1218 = vrcp.pop %v1210
        %v1219 = vrcp.pop %v1213
        %v1220 = vrcp.pop %v1216
        %v1221 = vmul.f32 %v1198, %v1217
        %v1222 = vmul.f32 %v1200, %v1218
        %v1223 = vmul.f32 %v1202, %v1219
        %v1224 = vmul.f32 %v1204, %v1220
        %v1225 = vpack.c.bf16 %v1221, %v1221
        %v1226 = vpack.c.bf16 %v1222, %v1222
        %v1227 = vpack.c.bf16 %v1223, %v1223
        %v1228 = vpack.c.bf16 %v1224, %v1224
        %v1230 = vsel %vm1104, %v1225, 0
        %vm1232 = vcmask 1043456
        %v1234 = vsel %vm1232, %v1094, 0
        %1236 = vmatpush.bf16.msra.mxu0 0
        %1237 = vmatpush.bf16.msra.mxu0 0
        %1238 = vmatpush.bf16.msra.mxu0 0
        %1239 = vmatpush.bf16.msra.mxu0 0
        %1240 = vmatpush.bf16.msra.mxu0 0
        %1241 = vmatpush.bf16.msra.mxu0 0
        %1242 = vmatpush.bf16.msra.mxu0 0
        %1243 = vmatpush.bf16.msra.mxu0 %v1234
        %1244 = vmatmul.bf16.gmra.mxu0 %v1230
        %v1245 = vpop.f32.mrf.mxu0
        %v1246 = vadd.f32 0.0, %v1245
        %v1247 = vpop.f32.mrf.mxu0
        %1248 = vdwg.mxu0
        %v1250 = vsel %vm1104, %v1226, 0
        %v1253 = vsel %vm1232, %v1097, 0
        %1255 = vmatpush.bf16.msra.mxu0 0
        %1256 = vmatpush.bf16.msra.mxu0 0
        %1257 = vmatpush.bf16.msra.mxu0 0
        %1258 = vmatpush.bf16.msra.mxu0 0
        %1259 = vmatpush.bf16.msra.mxu0 0
        %1260 = vmatpush.bf16.msra.mxu0 0
        %1261 = vmatpush.bf16.msra.mxu0 0
        %1262 = vmatpush.bf16.msra.mxu0 %v1253
        %1263 = vmatmul.bf16.gmra.mxu0 %v1250
        %v1264 = vpop.f32.mrf.mxu0
        %v1265 = vadd.f32 0.0, %v1264
        %v1266 = vpop.f32.mrf.mxu0
        %1267 = vdwg.mxu0
        %v1269 = vsel %vm1104, %v1227, 0
        %v1272 = vsel %vm1232, %v1100, 0
        %1274 = vmatpush.bf16.msra.mxu0 0
        %1275 = vmatpush.bf16.msra.mxu0 0
        %1276 = vmatpush.bf16.msra.mxu0 0
        %1277 = vmatpush.bf16.msra.mxu0 0
        %1278 = vmatpush.bf16.msra.mxu0 0
        %1279 = vmatpush.bf16.msra.mxu0 0
        %1280 = vmatpush.bf16.msra.mxu0 0
        %1281 = vmatpush.bf16.msra.mxu0 %v1272
        %1282 = vmatmul.bf16.gmra.mxu0 %v1269
        %v1283 = vpop.f32.mrf.mxu0
        %v1284 = vadd.f32 0.0, %v1283
        %v1285 = vpop.f32.mrf.mxu0
        %1286 = vdwg.mxu0
        %v1288 = vsel %vm1104, %v1228, 0
        %v1291 = vsel %vm1232, %v1103, 0
        %1293 = vmatpush.bf16.msra.mxu0 0
        %1294 = vmatpush.bf16.msra.mxu0 0
        %1295 = vmatpush.bf16.msra.mxu0 0
        %1296 = vmatpush.bf16.msra.mxu0 0
        %1297 = vmatpush.bf16.msra.mxu0 0
        %1298 = vmatpush.bf16.msra.mxu0 0
        %1299 = vmatpush.bf16.msra.mxu0 0
        %1300 = vmatpush.bf16.msra.mxu0 %v1291
        %1301 = vmatmul.bf16.gmra.mxu0 %v1288
        %v1302 = vpop.f32.mrf.mxu0
        %v1303 = vadd.f32 0.0, %v1302
        %v1304 = vpop.f32.mrf.mxu0
        %1305 = vdwg.mxu0
        %v1306 = vrot.slane %v1284, 4
        %v1307 = vsel %vm735, %v1306, %v1246
        %v1308 = vrot.slane %v1246, 4
        %v1309 = vsel %vm735, %v1284, %v1308
        %v1311 = vunpack.c.l.s4 1983009808
        %v1312 = vunpack.c.0.s8 %v1311
        %v1313 = vperm.slane %v1307, %v1312
        %v1315 = vunpack.c.l.s4 1983009808
        %v1316 = vunpack.c.0.s8 %v1315
        %v1317 = vperm.slane %v1309, %v1316
        %v1318 = vrot.slane %v1303, 4
        %v1319 = vsel %vm735, %v1318, %v1265
        %v1320 = vrot.slane %v1265, 4
        %v1321 = vsel %vm735, %v1303, %v1320
        %v1323 = vunpack.c.l.s4 1983009808
        %v1324 = vunpack.c.0.s8 %v1323
        %v1325 = vperm.slane %v1319, %v1324
        %v1327 = vunpack.c.l.s4 1983009808
        %v1328 = vunpack.c.0.s8 %v1327
        %v1329 = vperm.slane %v1321, %v1328
        %v1330 = vrot.slane %v1325, 4
        %v1331 = vsel %vm735, %v1330, %v1313
        %v1332 = vrot.slane %v1313, 4
        %v1333 = vsel %vm735, %v1325, %v1332
        %v1335 = vunpack.c.l.s4 1934713408
        %v1336 = vunpack.c.0.s8 %v1335
        %v1337 = vperm.slane %v1331, %v1336
        %v1339 = vunpack.c.l.s4 1934713408
        %v1340 = vunpack.c.0.s8 %v1339
        %v1341 = vperm.slane %v1333, %v1340
        %v1342 = vrot.slane %v1329, 4
        %v1343 = vsel %vm735, %v1342, %v1317
        %v1344 = vrot.slane %v1317, 4
        %v1345 = vsel %vm735, %v1329, %v1344
        %v1347 = vunpack.c.l.s4 1934713408
        %v1348 = vunpack.c.0.s8 %v1347
        %v1349 = vperm.slane %v1343, %v1348
        %v1351 = vunpack.c.l.s4 1934713408
        %v1352 = vunpack.c.0.s8 %v1351
        %v1353 = vperm.slane %v1345, %v1352
        %v1354 = vrot.slane %v1337, 4
        %v1355 = vsel %vm735, 0.0, %v1354
        %v1356 = vrot.slane %v1341, 4
        %v1357 = vsel %vm735, 0.0, %v1356
        %v1358 = vrot.slane %v1349, 4
        %v1359 = vsel %vm735, 0.0, %v1358
        %v1360 = vrot.slane %v1353, 4
        %v1361 = vsel %vm735, 0.0, %v1360
        %v1362 = vsel %vm735, %v1356, %v1337
        %v1364 = vunpack.c.l.s4 1983009808
        %v1365 = vunpack.c.0.s8 %v1364
        %v1366 = vperm.slane %v1362, %v1365
        %v1367 = vrot.slane %v1357, 4
        %v1368 = vsel %vm735, %v1367, %v1355
        %v1370 = vunpack.c.l.s4 1983009808
        %v1371 = vunpack.c.0.s8 %v1370
        %v1372 = vperm.slane %v1368, %v1371
        %v1373 = vsel %vm735, %v1360, %v1349
        %v1375 = vunpack.c.l.s4 1983009808
        %v1376 = vunpack.c.0.s8 %v1375
        %v1377 = vperm.slane %v1373, %v1376
        %v1378 = vrot.slane %v1361, 4
        %v1379 = vsel %vm735, %v1378, %v1359
        %v1381 = vunpack.c.l.s4 1983009808
        %v1382 = vunpack.c.0.s8 %v1381
        %v1383 = vperm.slane %v1379, %v1382
        %v1384 = vrot.slane %v1372, 4
        %v1385 = vsel %vm735, %v1384, %v1366
        %v1386 = vrot.slane %v1366, 4
        %v1387 = vsel %vm735, %v1372, %v1386
        %v1389 = vunpack.c.l.s4 1934713408
        %v1390 = vunpack.c.0.s8 %v1389
        %v1391 = vperm.slane %v1385, %v1390
        %v1393 = vunpack.c.l.s4 1934713408
        %v1394 = vunpack.c.0.s8 %v1393
        %v1395 = vperm.slane %v1387, %v1394
        %v1396 = vrot.slane %v1383, 4
        %v1397 = vsel %vm735, %v1396, %v1377
        %v1398 = vrot.slane %v1377, 4
        %v1399 = vsel %vm735, %v1383, %v1398
        %v1401 = vunpack.c.l.s4 1934713408
        %v1402 = vunpack.c.0.s8 %v1401
        %v1403 = vperm.slane %v1397, %v1402
        %v1405 = vunpack.c.l.s4 1934713408
        %v1406 = vunpack.c.0.s8 %v1405
        %v1407 = vperm.slane %v1399, %v1406
        %v1408 = vrot.slane %v1403, 4
        %v1409 = vsel %vm735, %v1408, %v1391
        %v1410 = vrot.slane %v1391, 4
        %v1411 = vsel %vm735, %v1403, %v1410
        %v1412 = vrot.slane %v1407, 4
        %v1413 = vsel %vm735, %v1412, %v1395
        %v1414 = vrot.slane %v1395, 4
        %v1415 = vsel %vm735, %v1407, %v1414
        %1417 = vrot.lane.b32.xlu0 %v1411, 8
        %v1418 = vpop.permute.xlu0 %1417
        %1421 = vrot.lane.b32.xlu0 %v1413, 16
        %v1422 = vpop.permute.xlu0 %1421
        %1425 = vrot.lane.b32.xlu0 %v1415, 24
        %v1426 = vpop.permute.xlu0 %1425
        %v1428 = vsel %vm1104, %v1409, %v1418
        %vm1429 = vcmask 130048
        %v1430 = vsel %vm1429, %v1428, %v1422
        %vm1431 = vcmask 195584
        %v1432 = vsel %vm1431, %v1430, %v1426
        %v1433 = vpack.c.bf16 %v1432, %v1432
        %v1434 = vld [vmem:[%s9] sm:$0xf]
        %v1435 = vld [vmem:[%s9 + $0x4] sm:$0xf]
        %v1436 = vld [vmem:[%s9 + $0x8] sm:$0xf]
        %v1437 = vld [vmem:[%s9 + $0xc] sm:$0xf]
        %v1438 = vld [vmem:[%s10] sm:$0x1]
        %v1440 = vperm.slane %v1438, 0
        %v1446 = vunpack.c.l.b16 %v1434
        %v1447 = vunpack.c.l.b16 %v1435
        %v1448 = vunpack.c.l.b16 %v1436
        %v1449 = vunpack.c.l.b16 %v1437
        %v1450 = vpack.c.b16 %v1447, %v1446
        %v1451 = vpack.c.b16 %v1449, %v1448
        %v1455 = vsel %vm580, %v1433, 0
        %1457 = vmatpush.bf16.msra.mxu0 0
        %1458 = vmatpush.bf16.msra.mxu0 0
        %1459 = vmatpush.bf16.msra.mxu0 0
        %1460 = vmatpush.bf16.msra.mxu0 0
        %1461 = vmatpush.bf16.msra.mxu0 0
        %1462 = vmatpush.bf16.msra.mxu0 0
        %1463 = vmatpush.bf16.msra.mxu0 %v1451
        %1464 = vmatpush.bf16.msra.mxu0 %v1450
        %1465 = vmatmul.bf16.gmra.mxu0 %v1455
        %v1466 = vpop.f32.mrf.mxu0
        %v1467 = vadd.f32 %v1440, %v1466
        %v1468 = vpop.f32.mrf.mxu0
        %1469 = vdwg.mxu0
        %v1470 = vadd.f32 %v577, %v1467
        %v1471 = vld [vmem:[%s11] sm:$0x1]
        %v1472 = vld [vmem:[%s12] sm:$0x1]
        %v1473 = vsel %vm580, %v1470, 0.0
        %1474 = vadd.xlane.f32.xlu0 %v1473
        %v1475 = vpop.xlane.xlu0 %1474
        %v1476 = vmul.f32 %v1475, %v590
        %v1477 = vmul.f32 %v1470, %v1470
        %v1478 = vsel %vm580, %v1477, 0.0
        %1479 = vadd.xlane.f32.xlu0 %v1478
        %v1480 = vpop.xlane.xlu0 %1479
        %v1481 = vmul.f32 %v1480, %v590
        %v1482 = vmul.f32 %v1476, %v1476
        %v1483 = vsub.f32 %v1481, %v1482
        %v1484 = vsub.f32 %v1470, %v1476
        %v1485 = vadd.f32 %v1483, 1e-05
        %v1486 = vrsqrt.pop %v1485
        %v1487 = vmul.f32 %v1486, %v1485
        %v1488 = vmul.f32 %v1487, %v1486
        %v1489 = vmul.f32 0.5, %v1488
        %v1490 = vsub.f32 1.5, %v1489
        %v1491 = vmul.f32 %v1486, %v1490
        %vm1492 = vweird.f32 %v1485
        %vm1493 = vweird.f32 %v1486
        %vm1494 = vmor %vm1492, %vm1493
        %v1495 = vsel %vm1494, %v1486, %v1491
        %v1496 = vmul.f32 %v1484, %v1495
        %v1498 = vperm.slane %v1471, 0
        %v1500 = vmul.f32 %v1496, %v1498
        %v1502 = vperm.slane %v1472, 0
        %v1504 = vadd.f32 %v1500, %v1502
        %v1505 = vpack.c.bf16 %v1504, %v1504
        %v1506 = vld [vmem:[#allocation5] sm:$0xf]
        %v1507 = vld [vmem:[#allocation5 + $0x4] sm:$0xf]
        %v1508 = vld [vmem:[#allocation5 + $0x8] sm:$0xf]
        %v1509 = vld [vmem:[#allocation5 + $0xc] sm:$0xf]
        %v1510 = vld [vmem:[%s14] sm:$0x1]
        %v1512 = vperm.slane %v1510, 0
        %v1518 = vunpack.c.l.b16 %v1506
        %v1519 = vunpack.c.l.b16 %v1507
        %v1520 = vunpack.c.l.b16 %v1508
        %v1521 = vunpack.c.l.b16 %v1509
        %v1522 = vpack.c.b16 %v1519, %v1518
        %v1523 = vpack.c.b16 %v1521, %v1520
        %v1527 = vsel %vm580, %v1505, 0
        %1529 = vmatpush.bf16.msra.mxu0 0
        %1530 = vmatpush.bf16.msra.mxu0 0
        %1531 = vmatpush.bf16.msra.mxu0 0
        %1532 = vmatpush.bf16.msra.mxu0 0
        %1533 = vmatpush.bf16.msra.mxu0 0
        %1534 = vmatpush.bf16.msra.mxu0 0
        %1535 = vmatpush.bf16.msra.mxu0 %v1523
        %1536 = vmatpush.bf16.msra.mxu0 %v1522
        %1537 = vmatmul.bf16.gmra.mxu0 %v1527
        %v1538 = vpop.f32.mrf.mxu0
        %v1539 = vadd.f32 %v1512, %v1538
        %v1540 = vpop.f32.mrf.mxu0
        %1541 = vdwg.mxu0
        %v1542 = vmax.f32 %v1539, 0.0
        %v1543 = vpack.c.bf16 %v1542, %v1542
        %v1544 = vld [vmem:[%s15] sm:$0xf]
        %v1545 = vld [vmem:[%s15 + $0x4] sm:$0xf]
        %v1546 = vld [vmem:[%s15 + $0x8] sm:$0xf]
        %v1547 = vld [vmem:[%s15 + $0xc] sm:$0xf]
        %v1548 = vld [vmem:[%s15 + $0x10] sm:$0xf]
        %v1549 = vld [vmem:[%s15 + $0x14] sm:$0xf]
        %v1550 = vld [vmem:[%s15 + $0x18] sm:$0xf]
        %v1551 = vld [vmem:[%s15 + $0x1c] sm:$0xf]
        %v1552 = vld [vmem:[%s15 + $0x20] sm:$0xf]
        %v1553 = vld [vmem:[%s15 + $0x24] sm:$0xf]
        %v1554 = vld [vmem:[%s15 + $0x28] sm:$0xf]
        %v1555 = vld [vmem:[%s15 + $0x2c] sm:$0xf]
        %v1556 = vld [vmem:[%s15 + $0x30] sm:$0xf]
        %v1557 = vld [vmem:[%s15 + $0x34] sm:$0xf]
        %v1558 = vld [vmem:[%s15 + $0x38] sm:$0xf]
        %v1559 = vld [vmem:[%s15 + $0x3c] sm:$0xf]
        %v1560 = vld [vmem:[%s16] sm:$0x1]
        %v1562 = vperm.slane %v1560, 0
        %v1580 = vunpack.c.l.b16 %v1544
        %v1581 = vunpack.c.l.b16 %v1545
        %v1582 = vunpack.c.l.b16 %v1546
        %v1583 = vunpack.c.l.b16 %v1547
        %v1584 = vunpack.c.l.b16 %v1548
        %v1585 = vunpack.c.l.b16 %v1549
        %v1586 = vunpack.c.l.b16 %v1550
        %v1587 = vunpack.c.l.b16 %v1551
        %v1588 = vunpack.c.l.b16 %v1552
        %v1589 = vunpack.c.l.b16 %v1553
        %v1590 = vunpack.c.l.b16 %v1554
        %v1591 = vunpack.c.l.b16 %v1555
        %v1592 = vunpack.c.l.b16 %v1556
        %v1593 = vunpack.c.l.b16 %v1557
        %v1594 = vunpack.c.l.b16 %v1558
        %v1595 = vunpack.c.l.b16 %v1559
        %v1596 = vpack.c.b16 %v1581, %v1580
        %v1597 = vpack.c.b16 %v1583, %v1582
        %v1598 = vpack.c.b16 %v1585, %v1584
        %v1599 = vpack.c.b16 %v1587, %v1586
        %v1600 = vpack.c.b16 %v1589, %v1588
        %v1601 = vpack.c.b16 %v1591, %v1590
        %v1602 = vpack.c.b16 %v1593, %v1592
        %v1603 = vpack.c.b16 %v1595, %v1594
        %1612 = vmatpush.bf16.msra.mxu0 %v1603
        %1613 = vmatpush.bf16.msra.mxu0 %v1602
        %1614 = vmatpush.bf16.msra.mxu0 %v1601
        %1615 = vmatpush.bf16.msra.mxu0 %v1600
        %1616 = vmatpush.bf16.msra.mxu0 %v1599
        %1617 = vmatpush.bf16.msra.mxu0 %v1598
        %1618 = vmatpush.bf16.msra.mxu0 %v1597
        %1619 = vmatpush.bf16.msra.mxu0 %v1596
        %1620 = vmatmul.bf16.gmra.mxu0 %v1543
        %v1621 = vpop.f32.mrf.mxu0
        %v1622 = vadd.f32 %v1562, %v1621
        %v1623 = vpop.f32.mrf.mxu0
        %1624 = vdwg.mxu0
        %v1625 = vadd.f32 %v1470, %v1622
        %1626 = vst.msk [vmem:[%s571] sm:$0xff] %vm580, %v1625
        %s1627 = sand.u32 %s403, 1
        %s1628 = scalar_lea.sflag [#allocation4], %s1627
        %s1629 = sand.u32 %s403, 1
        %s1630 = smul.addr %s1629, 8
        %s1631 = scalar_lea.vmem [#allocation7], %s1630
        // Predicated region
        $region97: #{tpu_custom_call.1} parent=87 // pred_check
          %p1632 = pneg %p413
        $region98: #{tpu_custom_call.1} parent=87 // pred_check_branch
          %1634 = sbr.rel (%p1632) target = $region100
        $region99: #{tpu_custom_call.1} parent=87 // pred_region
          %1636 = vsyncadd %s1628, 0
          %s1637 = smul.addr %s33, 8
          %s1638 = scalar_lea.hbm %s17, %s1637
          %s1640 = sshll.u32 %s1631, 4
          %s1641 = int_to_ptr.vmem [resolvable:$true] %s1640
          %s1642 = sshll.u32 %s1638, 4
          %s1643 = int_to_ptr.hbm [resolvable:$true] %s1642
          %1645 = dma.vmem_to_hbm [thread:$0]  %s1641, 128, %s1643, %s1628
        $region100: #{tpu_custom_call.1} parent=87 // pred_fallthru
          _
      $region88: #{tpu_custom_call.1} parent=5 // pred_fallthru
        _
      %p1646 = scmp.le.s32.totalorder 2, %s28
      // Predicated region
      $region101: #{tpu_custom_call.1} parent=5 // pred_check
        %p1647 = pneg %p1646
      $region102: #{tpu_custom_call.1} parent=5 // pred_check_branch
        %1649 = sbr.rel (%p1647) target = $region104
      $region103: #{tpu_custom_call.1} parent=5 // pred_region
        %s1650 = ssub.s32 %s28, 2
        // Predicated region
        $region105: #{tpu_custom_call.1} parent=103 // pred_check
          %p1651 = pneg %p419
        $region106: #{tpu_custom_call.1} parent=103 // pred_check_branch
          %1653 = sbr.rel (%p1651) target = $region108
        $region107: #{tpu_custom_call.1} parent=103 // pred_region
          %s1654 = sand.u32 %s404, 1
          %s1655 = scalar_lea.sflag [#allocation4], %s1654
          %s1656 = sand.u32 %s404, 1
          %s1657 = smul.addr %s1656, 8
          %s1658 = scalar_lea.vmem [#allocation7], %s1657
          %1660 = dma.done %s1655, 128
        $region108: #{tpu_custom_call.1} parent=103 // pred_fallthru
          _
      $region104: #{tpu_custom_call.1} parent=5 // pred_fallthru
        _
    $region6: #{tpu_custom_call.1} parent=1 // loop_footer
      %s32 = sadd.s32 1, %s28
    $region7: #{tpu_custom_call.1} parent=1 // loop_footer_branch
      %27 = sbr.rel target = $region3
    $region8: #{tpu_custom_call.1} parent=1 // loop_exit
      _
    %1661 = vsyncpa [#allocation3], 1
    %s1662 = scalar_lea.sflag [#allocation3], 1
    %1663 = vsyncpa %s1662, 1
    %1664 = vsyncpa [#allocation6], 1
    %1665 = vsyncpa [#allocation4], 1
    %s1666 = scalar_lea.sflag [#allocation4], 1
    %1667 = vsyncpa %s1666, 1

</llo_original>
